<compile_context>
chip_gen: v6e
topology: v6e:2x2x1
jax: 0.10.0
libtpu: 0.0.40
codegen_flags: <defaults>
</compile_context>

<pallas_src>
import functools

import jax
import jax.numpy as jnp
from jax.experimental import pallas as pl
from jax.experimental.pallas import tpu as pltpu

_MiB = 1024 * 1024


# ---------------------------------------------------------------------------
# helpers
# ---------------------------------------------------------------------------
def _round_up(x, m):
    return ((x + m - 1) // m) * m


def _pick_tile(n_p, cap):
    """Largest multiple of 128 dividing n_p that is <= cap (at least 128)."""
    cap = max(int(cap), 128)
    best = 128
    t = 128
    while t <= min(n_p, cap):
        if n_p % t == 0:
            best = t
        t += 128
    return best


def _vmem_budget():
    """Generation-aware (residency budget, vmem_limit_bytes) in bytes."""
    try:
        cap = int(pltpu.get_tpu_info().vmem_capacity_bytes)
    except Exception:  # off-TPU tracing / older jax: assume the smallest (v7x)
        cap = 64 * _MiB
    # v5e/v6e (128 MiB) -> limit ~108 MiB / budget ~100 MiB
    # v7x    ( 64 MiB) -> limit  ~48 MiB / budget  ~40 MiB
    limit = max(32 * _MiB, min(cap - 16 * _MiB, int(cap * 0.85)))
    budget = max(24 * _MiB, limit - 8 * _MiB)
    return budget, limit


# ---------------------------------------------------------------------------
# kernels
# ---------------------------------------------------------------------------
def _make_fused_kernel(compute_dtype):
    """All GCN blocks in one call.  Grid = (block b, row tile i, k tile)."""

    def kernel(adj_ref, x0_ref, out_ref, xbuf_ref):
        b = pl.program_id(0)
        i = pl.program_id(1)
        k = pl.program_id(2)
        nb = pl.num_programs(0)
        nk = pl.num_programs(2)

        tm = out_ref.shape[0]
        tk = adj_ref.shape[1]

        # One-time: stage the initial features into ping-pong slot 0.
        @pl.when((b == 0) & (i == 0) & (k == 0))
        def _():
            xbuf_ref[0] = x0_ref[...]

        cur = b % 2          # slot holding X_b
        nxt = 1 - cur        # slot that will hold X_{b+1}

        row_i = pl.multiple_of(i * tm, tm)
        row_k = pl.multiple_of(k * tk, tk)

        # k == 0: accumulator starts as the self-loop term (I @ X_b, this row
        # tile), read straight from the VMEM-resident carry.
        @pl.when(k == 0)
        def _():
            out_ref[...] = xbuf_ref[cur, pl.ds(row_i, tm), :].astype(jnp.float32)

        lhs = adj_ref[...]
        if lhs.dtype != compute_dtype:
            # e.g. int8 0/1 adjacency: dequantise on the VPU (via f32 hub).
            lhs = lhs.astype(jnp.float32).astype(compute_dtype)
        rhs = xbuf_ref[cur, pl.ds(row_k, tk), :]          # already compute_dtype
        out_ref[...] += jnp.dot(lhs, rhs, preferred_element_type=jnp.float32)

        # Last k: this row tile of X_{b+1} is finished -> stash it for the
        # next block (skipped on the last block; nobody reads it).
        @pl.when((k == nk - 1) & (b + 1 < nb))
        def _():
            xbuf_ref[nxt, pl.ds(row_i, tm), :] = out_ref[...].astype(xbuf_ref.dtype)

    return kernel


def _make_block_kernel(compute_dtype):
    """Single LightGCN block: out = (adj + I) @ x.  Grid = (row tile i, k)."""

    def kernel(adj_ref, xk_ref, xi_ref, out_ref):
        k = pl.program_id(1)

        @pl.when(k == 0)
        def _():
            out_ref[...] = xi_ref[...].astype(jnp.float32)

        lhs = adj_ref[...]
        if lhs.dtype != compute_dtype:
            lhs = lhs.astype(jnp.float32).astype(compute_dtype)
        rhs = xk_ref[...]
        if rhs.dtype != compute_dtype:
            rhs = rhs.astype(jnp.float32).astype(compute_dtype)
        out_ref[...] += jnp.dot(lhs, rhs, preferred_element_type=jnp.float32)

    return kernel


# ---------------------------------------------------------------------------
# wrapper
# ---------------------------------------------------------------------------
@functools.partial(
    jax.jit,
    static_argnames=("num_blocks", "mode", "tile_m", "tile_k",
                     "use_pipeline_mode"),
)
def _lightgcn_stack_impl(adj, x, *, num_blocks, mode, tile_m, tile_k,
                         use_pipeline_mode):
    n = adj.shape[0]
    d = x.shape[1]
    assert adj.shape == (n, n) and x.shape[0] == n
    assert num_blocks >= 1
    if mode not in ("auto", "resident", "stream", "hbm"):
        raise ValueError(mode)

    # bf16 MXU path whenever the adjacency is not f32 (bf16 / int8 storage).
    compute_dtype = jnp.float32 if adj.dtype == jnp.float32 else jnp.bfloat16
    out_store_dtype = x.dtype

    n_p = _round_up(n, 128)
    d_p = _round_up(d, 128)
    for t in (tile_m, tile_k):
        if t is not None:
            assert t % 128 == 0 and n_p % t == 0, (t, n_p)

    adj_p = adj
    if n_p != n:
        adj_p = jnp.pad(adj_p, ((0, n_p - n), (0, n_p - n)))
    x_f32 = x.astype(jnp.float32)
    if n_p != n or d_p != d:
        x_f32 = jnp.pad(x_f32, ((0, n_p - n), (0, d_p - d)))

    use_pm = bool(use_pipeline_mode) and hasattr(pl, "Buffered")
    budget, limit = _vmem_budget()

    adj_item = adj_p.dtype.itemsize
    c_item = jnp.dtype(compute_dtype).itemsize
    needs_adj_cast = adj_p.dtype != compute_dtype

    x0_bufs = 1 if use_pm else 2          # constant index -> single buffer
    adj_res_bufs = 1 if use_pm else 2
    adj_stream_bufs = 3 if use_pm else 2

    carry_bytes = 2 * n_p * d_p * c_item              # ping-pong feature carry
    x0_bytes = x0_bufs * n_p * d_p * c_item           # resident initial feats
    res_cast_tmp = n_p * n_p * c_item if needs_adj_cast else 0
    resident_cost = (carry_bytes + x0_bytes + res_cast_tmp
                     + adj_res_bufs * n_p * n_p * adj_item
                     + 2 * n_p * d_p * 4)             # output double buffer

    if mode == "auto":
        if resident_cost <= budget:
            mode = "resident"                 # adjacency DMA'd once for ALL blocks
        elif carry_bytes + x0_bytes + 8 * _MiB <= budget:
            mode = "stream"                   # adjacency streamed once per block
        else:
            mode = "hbm"                      # carry doesn't fit (e.g. v7x 64 MiB)

    def _spec(shape, index_map, bufs):
        if use_pm and bufs is not None:
            return pl.BlockSpec(shape, index_map,
                                pipeline_mode=pl.Buffered(buffer_count=bufs))
        return pl.BlockSpec(shape, index_map)

    if mode in ("resident", "stream"):
        if mode == "resident":
            tm = tk = n_p
        else:
            tm = tile_m if tile_m is not None else _pick_tile(n_p, 512)
            if tile_k is not None:
                tk = tile_k
            else:
                remaining = budget - (carry_bytes + x0_bytes + 2 * tm * d_p * 4)
                per_col = tm * (adj_stream_bufs * adj_item
                                + (c_item if needs_adj_cast else 0))
                tk = _pick_tile(n_p, max(remaining, 0) // max(per_col, 1))
        assert n_p % tm == 0 and n_p % tk == 0, (n_p, tm, tk)

        adj_const = (tm == n_p and tk == n_p)
        adj_bufs = adj_res_bufs if adj_const else adj_stream_bufs
        adj_reads = 1 if adj_const else num_blocks

        x0 = x_f32.astype(compute_dtype)

        cost = pl.CostEstimate(
            flops=2 * num_blocks * n_p * n_p * d_p,
            transcendentals=0,
            bytes_accessed=(adj_reads * n_p * n_p * adj_item
                            + n_p * d_p * c_item
                            + num_blocks * n_p * d_p * 4),
        )

        out = pl.pallas_call(
            _make_fused_kernel(compute_dtype),
            out_shape=jax.ShapeDtypeStruct((num_blocks, n_p, d_p), jnp.float32),
            grid_spec=pltpu.PrefetchScalarGridSpec(
                num_scalar_prefetch=0,
                grid=(num_blocks, n_p // tm, n_p // tk),
                in_specs=[
                    _spec((tm, tk), lambda b, i, k: (i, k), adj_bufs),
                    _spec((n_p, d_p), lambda b, i, k: (0, 0), 1),
                ],
                out_specs=pl.BlockSpec((None, tm, d_p),
                                       lambda b, i, k: (b, i, 0)),
                scratch_shapes=[pltpu.VMEM((2, n_p, d_p), compute_dtype)],
            ),
            compiler_params=pltpu.CompilerParams(
                # Block b+1 needs every row of block b from the per-core VMEM
                # carry -> no axis may be sharded across TensorCores.
                dimension_semantics=("arbitrary", "arbitrary", "arbitrary"),
                vmem_limit_bytes=limit,
            ),
            cost_estimate=cost,
        )(adj_p, x0)

    else:  # mode == "hbm": per-block kernel, features round-trip HBM (f32).
        tm = tile_m if tile_m is not None else _pick_tile(n_p, 512)
        if tile_k is not None:
            tk = tile_k
        else:
            per_col = (tm * (adj_stream_bufs * adj_item
                             + (c_item if needs_adj_cast else 0))
                       + 2 * d_p * 4)
            tk = _pick_tile(n_p, max(budget - 4 * tm * d_p * 4, 0)
                            // max(per_col, 1))
        assert n_p % tm == 0 and n_p % tk == 0, (n_p, tm, tk)

        block_call = pl.pallas_call(
            _make_block_kernel(compute_dtype),
            out_shape=jax.ShapeDtypeStruct((n_p, d_p), jnp.float32),
            grid_spec=pltpu.PrefetchScalarGridSpec(
                num_scalar_prefetch=0,
                grid=(n_p // tm, n_p // tk),
                in_specs=[
                    _spec((tm, tk), lambda i, k: (i, k), adj_stream_bufs),
                    pl.BlockSpec((tk, d_p), lambda i, k: (k, 0)),
                    pl.BlockSpec((tm, d_p), lambda i, k: (i, 0)),
                ],
                out_specs=pl.BlockSpec((tm, d_p), lambda i, k: (i, 0)),
            ),
            compiler_params=pltpu.CompilerParams(
                # Row tiles are independent -> usable by both v7x TensorCores.
                dimension_semantics=("parallel", "arbitrary"),
                vmem_limit_bytes=limit,
            ),
            cost_estimate=pl.CostEstimate(
                flops=2 * n_p * n_p * d_p,
                transcendentals=0,
                bytes_accessed=n_p * n_p * adj_item + 2 * n_p * d_p * 4,
            ),
        )

        cur = x_f32
        outs = []
        for _ in range(num_blocks):
            cur = block_call(adj_p, cur, cur)
            outs.append(cur)
        out = jnp.stack(outs, axis=0)

    if n_p != n or d_p != d:
        out = out[:, :n, :d]
    return out.astype(out_store_dtype)


_USE_PIPELINE_MODE = True


def lightgcn_stack(adj, x, *, num_blocks, mode="auto", tile_m=None, tile_k=None):
    """Return stacked hops [(adj+I) x, (adj+I)^2 x, ..., (adj+I)^num_blocks x]."""
    global _USE_PIPELINE_MODE
    kwargs = dict(num_blocks=num_blocks, mode=mode, tile_m=tile_m, tile_k=tile_k)
    if _USE_PIPELINE_MODE:
        try:
            return _lightgcn_stack_impl(adj, x, use_pipeline_mode=True, **kwargs)
        except Exception:
            # Older jax without BlockSpec(pipeline_mode=...), or a Mosaic
            # lowering that rejects single/triple buffering: retry with the
            # default double-buffered pipeline (budget math recomputed).
            _USE_PIPELINE_MODE = False
    return _lightgcn_stack_impl(adj, x, use_pipeline_mode=False, **kwargs)


# ---------------------------------------------------------------------------
# module port
# ---------------------------------------------------------------------------
class LGAlign:
    """JAX/Pallas port of the PyTorch LGAlign module.

    adj_dtype:
      "float32"  - exact f32 compute path (matches the PyTorch reference).
      "bfloat16" - bf16-native MXU path; exact for a 0/1 adjacency, features
                   are rounded to bf16 inside the kernel.
      "int8"     - 0/1 adjacency stored as int8 (1/4 the HBM bytes of f32),
                   cast in-kernel to bf16 for the MXU.
    NOTE: bfloat16/int8 are only exact for an unweighted 0/1 adjacency; a
    weighted / degree-normalised adjacency should use "float32".
    """

    def __init__(self, GCN_num_blocks, output_dim, s_feature, t_feature,
                 config=None, adj_dtype="float32"):
        self.GCN_num_blocks = GCN_num_blocks
        self.output_dim = output_dim
        self.s_feature = s_feature
        self.t_feature = t_feature
        self.adj_dtype = adj_dtype

    def _prep_adj(self, adj):
        return adj.astype(jnp.dtype(self.adj_dtype))

    def forward(self, adj, net="s"):
        if net == "s":
            emb_input = self.s_feature
        elif net == "t":
            emb_input = self.t_feature
        else:
            raise ValueError(net)
        outputs = [emb_input]
        if self.GCN_num_blocks == 0:
            return outputs
        stacked = lightgcn_stack(self._prep_adj(adj), emb_input,
                                 num_blocks=self.GCN_num_blocks)
        outputs.extend(stacked[b] for b in range(self.GCN_num_blocks))
        return outputs

    def forward_both(self, adj):
        """Fused s+t nets: adjacency read once for BOTH nets, MXU N-dim doubled."""
        ds_ = self.s_feature.shape[1]
        x = jnp.concatenate([self.s_feature, self.t_feature], axis=1)
        outs_s = [self.s_feature]
        outs_t = [self.t_feature]
        if self.GCN_num_blocks == 0:
            return outs_s, outs_t
        stacked = lightgcn_stack(self._prep_adj(adj), x,
                                 num_blocks=self.GCN_num_blocks)
        for b in range(self.GCN_num_blocks):
            outs_s.append(stacked[b, :, :ds_])
            outs_t.append(stacked[b, :, ds_:])
        return outs_s, outs_t


# ---------------------------------------------------------------------------
# reference + self-test
# ---------------------------------------------------------------------------
def _reference(adj, x, num_blocks):
    a = adj + jnp.eye(adj.shape[0], dtype=adj.dtype)
    outs = [x]
    cur = x
    for _ in range(num_blocks):
        cur = a @ cur
        outs.append(cur)
    return outs


def _check(got, exp, rel_tol):
    got = jnp.asarray(got, jnp.float32)
    exp = jnp.asarray(exp, jnp.float32)
    assert got.shape == exp.shape, (got.shape, exp.shape)
    scale = float(jnp.max(jnp.abs(exp))) + 1.0
    err = float(jnp.max(jnp.abs(got - exp)))
    assert err <= rel_tol * scale, (err, scale, rel_tol)


if __name__ == "__main__":
    key = jax.random.PRNGKey(0)
    k_adj, k_s, k_t = jax.random.split(key, 3)

    N = 200            # graph nodes (deliberately not a multiple of 128)
    D = 96             # per-net feature dim (padded to 128 inside the wrapper)
    GCN_num_blocks = 3

    adj = (jax.random.uniform(k_adj, (N, N), dtype=jnp.float32) < 0.1).astype(
        jnp.float32)
    s_feature = jax.random.normal(k_s, (N, D), dtype=jnp.float32)
    t_feature = jax.random.normal(k_t, (N, D), dtype=jnp.float32)

    ref_s = _reference(adj, s_feature, GCN_num_blocks)
    ref_t = _reference(adj, t_feature, GCN_num_blocks)

    # 1) exact f32 path, per-net forward (auto -> adjacency-resident fused kernel)
    model_f32 = LGAlign(GCN_num_blocks, D, s_feature, t_feature, config=None,
                        adj_dtype="float32")
    outs_s = model_f32.forward(adj, net="s")
    outs_t = model_f32.forward(adj, net="t")
    jax.block_until_ready(outs_s)
    jax.block_until_ready(outs_t)
    for got, exp in zip(outs_s + outs_t, ref_s + ref_t):
        _check(got, exp, 1e-3)

    # 2) forced streaming / HBM-carry fallback paths (still exact f32 compute),
    #    small tiles so multi-tile reduction + ping-pong staging are exercised.
    for m in ("stream", "hbm"):
        out = lightgcn_stack(adj, s_feature, num_blocks=GCN_num_blocks,
                             mode=m, tile_m=128, tile_k=128)
        jax.block_until_ready(out)
        for b in range(GCN_num_blocks):
            _check(out[b], ref_s[b + 1], 1e-3)

    # 3) fused s+t nets with an int8 adjacency (bf16 MXU path): adjacency read
    #    once for both nets, matmul N-dim doubled to 256.
    model_q = LGAlign(GCN_num_blocks, D, s_feature, t_feature, config=None,
                      adj_dtype="int8")
    fused_s, fused_t = model_q.forward_both(adj)
    jax.block_until_ready(fused_s)
    jax.block_until_ready(fused_t)
    for got, exp in zip(fused_s + fused_t, ref_s + ref_t):
        _check(got, exp, 5e-2)

    print("KERNEL_OK")
</pallas_src>

<mosaic_0001>
module attributes {stable_mosaic.version = 11 : i64} {
  func.func @kernel(%arg0: i32, %arg1: i32, %arg2: i32, %arg3: memref<256x256xf32, #tpu.memory_space<vmem>>, %arg4: memref<256x128xf32, #tpu.memory_space<vmem>>, %arg5: memref<1x256x128xf32, #tpu.memory_space<vmem>>, %arg6: memref<2x256x128xf32, #tpu.memory_space<vmem>>) attributes {dimension_semantics = [#tpu.dimension_semantics<arbitrary>, #tpu.dimension_semantics<arbitrary>, #tpu.dimension_semantics<arbitrary>], iteration_bounds = array<i64: 3, 1, 1>, scalar_prefetch = 0 : i64, scratch_operands = 1 : i64, tpu.core_type = #tpu.core_type<tc>, window_params = [{pipeline_mode = #tpu.pipeline_mode<synchronous>, transform_indices = @transform_0, window_bounds = array<i64: 256, 256>}, {pipeline_mode = #tpu.pipeline_mode<synchronous>, transform_indices = @transform_1, window_bounds = array<i64: 256, 128>}, {transform_indices = @transform_2, window_bounds = array<i64: 1, 256, 128>}]} {
    %c0_i32 = arith.constant 0 : i32
    %0 = arith.cmpi eq, %arg0, %c0_i32 : i32
    %c0_i32_0 = arith.constant 0 : i32
    %1 = arith.cmpi eq, %arg1, %c0_i32_0 : i32
    %2 = arith.andi %0, %1 : i1
    %c0_i32_1 = arith.constant 0 : i32
    %3 = arith.cmpi eq, %arg2, %c0_i32_1 : i32
    %4 = arith.andi %2, %3 : i1
    %5 = arith.extui %4 : i1 to i32
    %c0_i32_2 = arith.constant 0 : i32
    %6 = arith.cmpi ne, %5, %c0_i32_2 : i32
    scf.if %6 {
      %c0_22 = arith.constant 0 : index
      %c0_23 = arith.constant 0 : index
      %43 = vector.load %arg4[%c0_22, %c0_23] : memref<256x128xf32, #tpu.memory_space<vmem>>, vector<256x128xf32>
      %c0_24 = arith.constant 0 : index
      %c0_25 = arith.constant 0 : index
      %c0_26 = arith.constant 0 : index
      %44 = vector.load %arg6[%c0_24, %c0_25, %c0_26] : memref<2x256x128xf32, #tpu.memory_space<vmem>>, vector<1x256x128xf32>
      %45 = vector.shape_cast %44 : vector<1x256x128xf32> to vector<256x128xf32>
      %46 = vector.shape_cast %43 : vector<256x128xf32> to vector<1x256x128xf32>
      tpu.vector_store %arg6[%c0_24, %c0_25, %c0_26], %46 {strides = array<i32>} : memref<2x256x128xf32, #tpu.memory_space<vmem>>, vector<1x256x128xf32>,
    } else {
    }
    %c2_i32 = arith.constant 2 : i32
    %c0_i32_3 = arith.constant 0 : i32
    %7 = arith.cmpi eq, %c2_i32, %c0_i32_3 : i32
    %c1_i32 = arith.constant 1 : i32
    %8 = arith.select %7, %c1_i32, %c2_i32 : i32
    %9 = arith.remsi %arg0, %8 : i32
    %c0_i32_4 = arith.constant 0 : i32
    %10 = arith.cmpi ne, %9, %c0_i32_4 : i32
    %c0_i32_5 = arith.constant 0 : i32
    %11 = arith.cmpi slt, %9, %c0_i32_5 : i32
    %c0_i32_6 = arith.constant 0 : i32
    %12 = arith.cmpi slt, %8, %c0_i32_6 : i32
    %13 = arith.xori %11, %12 : i1
    %14 = arith.andi %13, %10 : i1
    %15 = arith.addi %9, %8 : i32
    %16 = arith.select %14, %15, %9 : i32
    %c1_i32_7 = arith.constant 1 : i32
    %17 = arith.subi %c1_i32_7, %16 : i32
    %c256_i32 = arith.constant 256 : i32
    %18 = arith.muli %arg1, %c256_i32 : i32
    %19 = tpu.assume_multiple %18, 256 : i32
    %c256_i32_8 = arith.constant 256 : i32
    %20 = arith.muli %arg2, %c256_i32_8 : i32
    %21 = tpu.assume_multiple %20, 256 : i32
    %c0_i32_9 = arith.constant 0 : i32
    %22 = arith.cmpi eq, %arg2, %c0_i32_9 : i32
    %23 = arith.extui %22 : i1 to i32
    %c0_i32_10 = arith.constant 0 : i32
    %24 = arith.cmpi ne, %23, %c0_i32_10 : i32
    scf.if %24 {
      %43 = arith.index_cast %16 : i32 to index
      %44 = arith.index_cast %19 : i32 to index
      %c0_22 = arith.constant 0 : index
      %45 = vector.load %arg6[%43, %44, %c0_22] : memref<2x256x128xf32, #tpu.memory_space<vmem>>, vector<1x256x128xf32>
      %46 = vector.shape_cast %45 : vector<1x256x128xf32> to vector<256x128xf32>
      %c0_23 = arith.constant 0 : index
      %c0_24 = arith.constant 0 : index
      %c0_25 = arith.constant 0 : index
      %47 = vector.load %arg5[%c0_23, %c0_24, %c0_25] : memref<1x256x128xf32, #tpu.memory_space<vmem>>, vector<1x256x128xf32>
      %48 = vector.shape_cast %47 : vector<1x256x128xf32> to vector<256x128xf32>
      %49 = vector.shape_cast %46 : vector<256x128xf32> to vector<1x256x128xf32>
      tpu.vector_store %arg5[%c0_23, %c0_24, %c0_25], %49 {strides = array<i32>} : memref<1x256x128xf32, #tpu.memory_space<vmem>>, vector<1x256x128xf32>,
    } else {
    }
    %c0 = arith.constant 0 : index
    %c0_11 = arith.constant 0 : index
    %25 = vector.load %arg3[%c0, %c0_11] : memref<256x256xf32, #tpu.memory_space<vmem>>, vector<256x256xf32>
    %26 = arith.index_cast %16 : i32 to index
    %27 = arith.index_cast %21 : i32 to index
    %c0_12 = arith.constant 0 : index
    %28 = vector.load %arg6[%26, %27, %c0_12] : memref<2x256x128xf32, #tpu.memory_space<vmem>>, vector<1x256x128xf32>
    %29 = vector.shape_cast %28 : vector<1x256x128xf32> to vector<256x128xf32>
    %c0_13 = arith.constant 0 : index
    %c0_14 = arith.constant 0 : index
    %c0_15 = arith.constant 0 : index
    %30 = vector.load %arg5[%c0_13, %c0_14, %c0_15] : memref<1x256x128xf32, #tpu.memory_space<vmem>>, vector<1x256x128xf32>
    %31 = vector.shape_cast %30 : vector<1x256x128xf32> to vector<256x128xf32>
    %cst = arith.constant dense<0.000000e+00> : vector<256x128xf32>
    %32 = tpu.matmul %25, %29, %cst {dimension_numbers = #tpu.dot_dimension_numbers<[1], [0], [0], [1], [0, 0, 1, 1], [], []>} : vector<256x256xf32>, vector<256x128xf32>, vector<256x128xf32> -> vector<256x128xf32>
    %33 = arith.addf %31, %32 : vector<256x128xf32>
    %c0_16 = arith.constant 0 : index
    %c0_17 = arith.constant 0 : index
    %c0_18 = arith.constant 0 : index
    %34 = vector.load %arg5[%c0_16, %c0_17, %c0_18] : memref<1x256x128xf32, #tpu.memory_space<vmem>>, vector<1x256x128xf32>
    %35 = vector.shape_cast %34 : vector<1x256x128xf32> to vector<256x128xf32>
    %36 = vector.shape_cast %33 : vector<256x128xf32> to vector<1x256x128xf32>
    tpu.vector_store %arg5[%c0_16, %c0_17, %c0_18], %36 {strides = array<i32>} : memref<1x256x128xf32, #tpu.memory_space<vmem>>, vector<1x256x128xf32>,
    %c0_i32_19 = arith.constant 0 : i32
    %37 = arith.cmpi eq, %arg2, %c0_i32_19 : i32
    %c1_i32_20 = arith.constant 1 : i32
    %38 = arith.addi %arg0, %c1_i32_20 : i32
    %c3_i32 = arith.constant 3 : i32
    %39 = arith.cmpi slt, %38, %c3_i32 : i32
    %40 = arith.andi %37, %39 : i1
    %41 = arith.extui %40 : i1 to i32
    %c0_i32_21 = arith.constant 0 : i32
    %42 = arith.cmpi ne, %41, %c0_i32_21 : i32
    scf.if %42 {
      %c0_22 = arith.constant 0 : index
      %c0_23 = arith.constant 0 : index
      %c0_24 = arith.constant 0 : index
      %43 = vector.load %arg5[%c0_22, %c0_23, %c0_24] : memref<1x256x128xf32, #tpu.memory_space<vmem>>, vector<1x256x128xf32>
      %44 = vector.shape_cast %43 : vector<1x256x128xf32> to vector<256x128xf32>
      %45 = arith.index_cast %17 : i32 to index
      %46 = arith.index_cast %19 : i32 to index
      %c0_25 = arith.constant 0 : index
      %47 = vector.load %arg6[%45, %46, %c0_25] : memref<2x256x128xf32, #tpu.memory_space<vmem>>, vector<1x256x128xf32>
      %48 = vector.shape_cast %47 : vector<1x256x128xf32> to vector<256x128xf32>
      %49 = vector.shape_cast %44 : vector<256x128xf32> to vector<1x256x128xf32>
      tpu.vector_store %arg6[%45, %46, %c0_25], %49 {strides = array<i32>} : memref<2x256x128xf32, #tpu.memory_space<vmem>>, vector<1x256x128xf32>,
    } else {
    }
    return
  }
  func.func @transform_0(%arg0: i32, %arg1: i32, %arg2: i32) -> (i32, i32) {
    %c0_i32 = arith.constant 0 : i32
    return %arg1, %arg2 : i32, i32
  }
  func.func @transform_1(%arg0: i32, %arg1: i32, %arg2: i32) -> (i32, i32) {
    %c0_i32 = arith.constant 0 : i32
    %c0_i32_0 = arith.constant 0 : i32
    %c0_i32_1 = arith.constant 0 : i32
    return %c0_i32, %c0_i32_0 : i32, i32
  }
  func.func @transform_2(%arg0: i32, %arg1: i32, %arg2: i32) -> (i32, i32, i32) {
    %c0_i32 = arith.constant 0 : i32
    %c0_i32_0 = arith.constant 0 : i32
    return %arg0, %arg1, %c0_i32 : i32, i32, i32
  }
}

module attributes {stable_mosaic.version = 11 : i64} {
  func.func @kernel(%arg0: i32, %arg1: i32, %arg2: i32, %arg3: memref<256x256xf32, #tpu.memory_space<vmem>>, %arg4: memref<256x128xf32, #tpu.memory_space<vmem>>, %arg5: memref<1x256x128xf32, #tpu.memory_space<vmem>>, %arg6: memref<2x256x128xf32, #tpu.memory_space<vmem>>) attributes {dimension_semantics = [#tpu.dimension_semantics<arbitrary>, #tpu.dimension_semantics<arbitrary>, #tpu.dimension_semantics<arbitrary>], iteration_bounds = array<i64: 3, 1, 1>, scalar_prefetch = 0 : i64, scratch_operands = 1 : i64, tpu.core_type = #tpu.core_type<tc>, window_params = [{transform_indices = @transform_0, window_bounds = array<i64: 256, 256>}, {pipeline_mode = #tpu.pipeline_mode<synchronous>, transform_indices = @transform_1, window_bounds = array<i64: 256, 128>}, {transform_indices = @transform_2, window_bounds = array<i64: 1, 256, 128>}]} {
    %c0_i32 = arith.constant 0 : i32
    %0 = arith.cmpi eq, %arg0, %c0_i32 : i32
    %c0_i32_0 = arith.constant 0 : i32
    %1 = arith.cmpi eq, %arg1, %c0_i32_0 : i32
    %2 = arith.andi %0, %1 : i1
    %c0_i32_1 = arith.constant 0 : i32
    %3 = arith.cmpi eq, %arg2, %c0_i32_1 : i32
    %4 = arith.andi %2, %3 : i1
    %5 = arith.extui %4 : i1 to i32
    %c0_i32_2 = arith.constant 0 : i32
    %6 = arith.cmpi ne, %5, %c0_i32_2 : i32
    scf.if %6 {
      %c0_22 = arith.constant 0 : index
      %c0_23 = arith.constant 0 : index
      %43 = vector.load %arg4[%c0_22, %c0_23] : memref<256x128xf32, #tpu.memory_space<vmem>>, vector<256x128xf32>
      %c0_24 = arith.constant 0 : index
      %c0_25 = arith.constant 0 : index
      %c0_26 = arith.constant 0 : index
      %44 = vector.load %arg6[%c0_24, %c0_25, %c0_26] : memref<2x256x128xf32, #tpu.memory_space<vmem>>, vector<1x256x128xf32>
      %45 = vector.shape_cast %44 : vector<1x256x128xf32> to vector<256x128xf32>
      %46 = vector.shape_cast %43 : vector<256x128xf32> to vector<1x256x128xf32>
      tpu.vector_store %arg6[%c0_24, %c0_25, %c0_26], %46 {strides = array<i32>} : memref<2x256x128xf32, #tpu.memory_space<vmem>>, vector<1x256x128xf32>,
    } else {
    }
    %c2_i32 = arith.constant 2 : i32
    %c0_i32_3 = arith.constant 0 : i32
    %7 = arith.cmpi eq, %c2_i32, %c0_i32_3 : i32
    %c1_i32 = arith.constant 1 : i32
    %8 = arith.select %7, %c1_i32, %c2_i32 : i32
    %9 = arith.remsi %arg0, %8 : i32
    %c0_i32_4 = arith.constant 0 : i32
    %10 = arith.cmpi ne, %9, %c0_i32_4 : i32
    %c0_i32_5 = arith.constant 0 : i32
    %11 = arith.cmpi slt, %9, %c0_i32_5 : i32
    %c0_i32_6 = arith.constant 0 : i32
    %12 = arith.cmpi slt, %8, %c0_i32_6 : i32
    %13 = arith.xori %11, %12 : i1
    %14 = arith.andi %13, %10 : i1
    %15 = arith.addi %9, %8 : i32
    %16 = arith.select %14, %15, %9 : i32
    %c1_i32_7 = arith.constant 1 : i32
    %17 = arith.subi %c1_i32_7, %16 : i32
    %c256_i32 = arith.constant 256 : i32
    %18 = arith.muli %arg1, %c256_i32 : i32
    %19 = tpu.assume_multiple %18, 256 : i32
    %c256_i32_8 = arith.constant 256 : i32
    %20 = arith.muli %arg2, %c256_i32_8 : i32
    %21 = tpu.assume_multiple %20, 256 : i32
    %c0_i32_9 = arith.constant 0 : i32
    %22 = arith.cmpi eq, %arg2, %c0_i32_9 : i32
    %23 = arith.extui %22 : i1 to i32
    %c0_i32_10 = arith.constant 0 : i32
    %24 = arith.cmpi ne, %23, %c0_i32_10 : i32
    scf.if %24 {
      %43 = arith.index_cast %16 : i32 to index
      %44 = arith.index_cast %19 : i32 to index
      %c0_22 = arith.constant 0 : index
      %45 = vector.load %arg6[%43, %44, %c0_22] : memref<2x256x128xf32, #tpu.memory_space<vmem>>, vector<1x256x128xf32>
      %46 = vector.shape_cast %45 : vector<1x256x128xf32> to vector<256x128xf32>
      %c0_23 = arith.constant 0 : index
      %c0_24 = arith.constant 0 : index
      %c0_25 = arith.constant 0 : index
      %47 = vector.load %arg5[%c0_23, %c0_24, %c0_25] : memref<1x256x128xf32, #tpu.memory_space<vmem>>, vector<1x256x128xf32>
      %48 = vector.shape_cast %47 : vector<1x256x128xf32> to vector<256x128xf32>
      %49 = vector.shape_cast %46 : vector<256x128xf32> to vector<1x256x128xf32>
      tpu.vector_store %arg5[%c0_23, %c0_24, %c0_25], %49 {strides = array<i32>} : memref<1x256x128xf32, #tpu.memory_space<vmem>>, vector<1x256x128xf32>,
    } else {
    }
    %c0 = arith.constant 0 : index
    %c0_11 = arith.constant 0 : index
    %25 = vector.load %arg3[%c0, %c0_11] : memref<256x256xf32, #tpu.memory_space<vmem>>, vector<256x256xf32>
    %26 = arith.index_cast %16 : i32 to index
    %27 = arith.index_cast %21 : i32 to index
    %c0_12 = arith.constant 0 : index
    %28 = vector.load %arg6[%26, %27, %c0_12] : memref<2x256x128xf32, #tpu.memory_space<vmem>>, vector<1x256x128xf32>
    %29 = vector.shape_cast %28 : vector<1x256x128xf32> to vector<256x128xf32>
    %c0_13 = arith.constant 0 : index
    %c0_14 = arith.constant 0 : index
    %c0_15 = arith.constant 0 : index
    %30 = vector.load %arg5[%c0_13, %c0_14, %c0_15] : memref<1x256x128xf32, #tpu.memory_space<vmem>>, vector<1x256x128xf32>
    %31 = vector.shape_cast %30 : vector<1x256x128xf32> to vector<256x128xf32>
    %cst = arith.constant dense<0.000000e+00> : vector<256x128xf32>
    %32 = tpu.matmul %25, %29, %cst {dimension_numbers = #tpu.dot_dimension_numbers<[1], [0], [0], [1], [0, 0, 1, 1], [], []>} : vector<256x256xf32>, vector<256x128xf32>, vector<256x128xf32> -> vector<256x128xf32>
    %33 = arith.addf %31, %32 : vector<256x128xf32>
    %c0_16 = arith.constant 0 : index
    %c0_17 = arith.constant 0 : index
    %c0_18 = arith.constant 0 : index
    %34 = vector.load %arg5[%c0_16, %c0_17, %c0_18] : memref<1x256x128xf32, #tpu.memory_space<vmem>>, vector<1x256x128xf32>
    %35 = vector.shape_cast %34 : vector<1x256x128xf32> to vector<256x128xf32>
    %36 = vector.shape_cast %33 : vector<256x128xf32> to vector<1x256x128xf32>
    tpu.vector_store %arg5[%c0_16, %c0_17, %c0_18], %36 {strides = array<i32>} : memref<1x256x128xf32, #tpu.memory_space<vmem>>, vector<1x256x128xf32>,
    %c0_i32_19 = arith.constant 0 : i32
    %37 = arith.cmpi eq, %arg2, %c0_i32_19 : i32
    %c1_i32_20 = arith.constant 1 : i32
    %38 = arith.addi %arg0, %c1_i32_20 : i32
    %c3_i32 = arith.constant 3 : i32
    %39 = arith.cmpi slt, %38, %c3_i32 : i32
    %40 = arith.andi %37, %39 : i1
    %41 = arith.extui %40 : i1 to i32
    %c0_i32_21 = arith.constant 0 : i32
    %42 = arith.cmpi ne, %41, %c0_i32_21 : i32
    scf.if %42 {
      %c0_22 = arith.constant 0 : index
      %c0_23 = arith.constant 0 : index
      %c0_24 = arith.constant 0 : index
      %43 = vector.load %arg5[%c0_22, %c0_23, %c0_24] : memref<1x256x128xf32, #tpu.memory_space<vmem>>, vector<1x256x128xf32>
      %44 = vector.shape_cast %43 : vector<1x256x128xf32> to vector<256x128xf32>
      %45 = arith.index_cast %17 : i32 to index
      %46 = arith.index_cast %19 : i32 to index
      %c0_25 = arith.constant 0 : index
      %47 = vector.load %arg6[%45, %46, %c0_25] : memref<2x256x128xf32, #tpu.memory_space<vmem>>, vector<1x256x128xf32>
      %48 = vector.shape_cast %47 : vector<1x256x128xf32> to vector<256x128xf32>
      %49 = vector.shape_cast %44 : vector<256x128xf32> to vector<1x256x128xf32>
      tpu.vector_store %arg6[%45, %46, %c0_25], %49 {strides = array<i32>} : memref<2x256x128xf32, #tpu.memory_space<vmem>>, vector<1x256x128xf32>,
    } else {
    }
    return
  }
  func.func @transform_0(%arg0: i32, %arg1: i32, %arg2: i32) -> (i32, i32) {
    %c0_i32 = arith.constant 0 : i32
    return %arg1, %arg2 : i32, i32
  }
  func.func @transform_1(%arg0: i32, %arg1: i32, %arg2: i32) -> (i32, i32) {
    %c0_i32 = arith.constant 0 : i32
    %c0_i32_0 = arith.constant 0 : i32
    %c0_i32_1 = arith.constant 0 : i32
    return %c0_i32, %c0_i32_0 : i32, i32
  }
  func.func @transform_2(%arg0: i32, %arg1: i32, %arg2: i32) -> (i32, i32, i32) {
    %c0_i32 = arith.constant 0 : i32
    %c0_i32_0 = arith.constant 0 : i32
    return %arg0, %arg1, %c0_i32 : i32, i32, i32
  }
}

</mosaic_0001>

<llo_original>
// kernel: _lightgcn_stack_impl.1
$region0: #{_lightgcn_stack_impl.1}
  #allocation0 [shape = 'u32[]', space=smem, size = 0x4, offset = 0x4, fixed_abs, tag = 'smem constant byte address 0x4 - core index']
  #allocation1 [shape = 'u32[144,128]{1,0:T(1,128)}', space=vmem, size = 0x12000, scoped, tag = 'internal scratch']
  #allocation2 [shape = 'f32[2,256,128]{2,1,0:T(8,128)}', space=vmem, size = 0x40000, scoped, tag = 'scratch operand']
  %s0 = inlined_call_operand.vmem [shape: f32[256,256], index: 0, kind: input, shape index: {}]
  %s1 = inlined_call_operand.vmem [shape: f32[256,128], index: 1, kind: input, shape index: {}]
  %s2 = inlined_call_operand.vmem [shape: f32[3,256,128], index: 2, kind: output, shape index: {}]
  %s3 = sld [smem:[#allocation0]]
  $region53: #{_lightgcn_stack_impl.1} parent=0
    _
  %s5 = ssub.s32 1, %s3
  %s6 = scalar_select 0, %s5, %s3
  loop: start=0, step=1, limit=5
  $region2: #{_lightgcn_stack_impl.1} parent=0 // loop_pre_header
    _
  $region3: #{_lightgcn_stack_impl.1} parent=0 // loop_header
    %s8 = sphi 0, %s12
    %p9 = scmp.ge.s32.totalorder %s8, 5
    %s15 = sphi 0, %s34
    %s16 = sphi 0, %s30
    %s17 = sphi 0, %s26
    %s18 = sphi 0, %s15
    %s19 = sphi 0, %s16
    %s20 = sphi 0, %s17
    %s21 = sphi 0, %s18
    %s22 = sphi 0, %s19
    %s23 = sphi 0, %s20
    %s39 = sphi 0, %s41
    %s42 = sphi 0, %s39
    %s43 = sphi 0, %s42
    %s59 = sphi 0, %s43
    %s63 = sphi 0, %s63
    %s65 = sphi 0, %s63
    %s66 = sphi 0, %s65
    %s80 = sphi 0, %s66
    %s88 = sphi 0, %s90
    %s91 = sphi 0, %s88
    %s92 = sphi 0, %s91
    %s108 = sphi 0, %s92
  $region4: #{_lightgcn_stack_impl.1} parent=0 // loop_header_branch
    %11 = sbr.rel (%p9) target = $region8
  $region5: #{_lightgcn_stack_impl.1} parent=0 // loop_body
    %s13 = ssub.s32 %s8, 1
    %s14 = ssub.s32 %s8, 2
    %s24 = sadd.s32 1, %s17
    %p25 = scmp.ge.s32.totalorder %s24, 1
    %s26 = scalar_select %p25, 0, %s24
    %s27 = sadd.s32 1, %s16
    %s28 = scalar_select %p25, %s27, %s16
    %p29 = scmp.ge.s32.totalorder %s28, 1
    %s30 = scalar_select %p29, 0, %s28
    %s31 = sadd.s32 1, %s15
    %s32 = scalar_select %p29, %s31, %s15
    %p33 = scmp.ge.s32.totalorder %s32, 3
    %s34 = scalar_select %p33, 0, %s32
    %s35 = ssub.s32 %s16, %s30
    %s36 = ssub.s32 %s17, %s26
    %s37 = sor.u32 %s35, %s36
    %p38 = scmp.eq.s32.totalorder %s37, 0
    %s40 = sadd.s32 %s39, 1
    %s41 = scalar_select %p38, %s39, %s40
    %p44 = pneg %p38
    %p45 = scmp.eq.s32.totalorder %s8, 2
    %p46 = por %p44, %p45
    %p47 = scmp.ne.s32.totalorder %s39, %s42
    %p48 = scmp.eq.s32.totalorder %s8, 0
    %p49 = por %p47, %p48
    %p50 = scmp.ne.s32.totalorder %s39, %s42
    %p51 = scmp.eq.s32.totalorder %s13, 2
    %p52 = por %p50, %p51
    %p53 = scmp.ne.s32.totalorder %s42, %s43
    %p54 = scmp.eq.s32.totalorder %s13, 0
    %p55 = por %p53, %p54
    %p56 = scmp.ne.s32.totalorder %s42, %s43
    %p57 = scmp.eq.s32.totalorder %s14, 2
    %p58 = por %p56, %p57
    %p60 = scmp.ne.s32.totalorder %s43, %s59
    %p61 = scmp.eq.s32.totalorder %s14, 0
    %p62 = por %p60, %p61
    %s64 = sadd.s32 %s63, 1
    %p67 = scmp.eq.s32.totalorder %s8, 2
    %p68 = scmp.ne.s32.totalorder %s63, %s65
    %p69 = scmp.eq.s32.totalorder %s8, 0
    %p70 = por %p68, %p69
    %p71 = scmp.ne.s32.totalorder %s63, %s65
    %p72 = scmp.eq.s32.totalorder %s13, 2
    %p73 = por %p71, %p72
    %p74 = scmp.ne.s32.totalorder %s65, %s66
    %p75 = scmp.eq.s32.totalorder %s13, 0
    %p76 = por %p74, %p75
    %p77 = scmp.ne.s32.totalorder %s65, %s66
    %p78 = scmp.eq.s32.totalorder %s14, 2
    %p79 = por %p77, %p78
    %p81 = scmp.ne.s32.totalorder %s66, %s80
    %p82 = scmp.eq.s32.totalorder %s14, 0
    %p83 = por %p81, %p82
    %s84 = ssub.s32 %s15, %s34
    %s85 = ssub.s32 %s16, %s30
    %s86 = sor.u32 %s84, %s85
    %p87 = scmp.eq.s32.totalorder %s86, 0
    %s89 = sadd.s32 %s88, 1
    %s90 = scalar_select %p87, %s88, %s89
    %p93 = pneg %p87
    %p94 = scmp.eq.s32.totalorder %s8, 2
    %p95 = por %p93, %p94
    %p96 = scmp.ne.s32.totalorder %s88, %s91
    %p97 = scmp.eq.s32.totalorder %s8, 0
    %p98 = por %p96, %p97
    %p99 = scmp.ne.s32.totalorder %s88, %s91
    %p100 = scmp.eq.s32.totalorder %s13, 2
    %p101 = por %p99, %p100
    %p102 = scmp.ne.s32.totalorder %s91, %s92
    %p103 = scmp.eq.s32.totalorder %s13, 0
    %p104 = por %p102, %p103
    %p105 = scmp.ne.s32.totalorder %s91, %s92
    %p106 = scmp.eq.s32.totalorder %s14, 2
    %p107 = por %p105, %p106
    %p109 = scmp.ne.s32.totalorder %s92, %s108
    %p110 = scmp.eq.s32.totalorder %s14, 0
    %p111 = por %p109, %p110
    %p112 = scmp.le.s32.totalorder 1, %s8
    %p113 = scmp.lt.s32.totalorder %s8, 4
    %p114 = pnand %p112, %p113
    %p115 = pneg %p114
    // Predicated region
    $region9: #{_lightgcn_stack_impl.1} parent=5 // pred_check
      _
    $region10: #{_lightgcn_stack_impl.1} parent=5 // pred_check_branch
      %117 = sbr.rel (%p114) target = $region12
    $region11: #{_lightgcn_stack_impl.1} parent=5 // pred_region
      %s118 = ssub.s32 %s8, 1
      // Predicated region
      $region13: #{_lightgcn_stack_impl.1} parent=11 // pred_check
        %p119 = pneg %p55
      $region14: #{_lightgcn_stack_impl.1} parent=11 // pred_check_branch
        %121 = sbr.rel (%p119) target = $region16
      $region15: #{_lightgcn_stack_impl.1} parent=11 // pred_region
        %s122 = smul.u32 32, %s19
        %s123 = smul.u32 2, %s20
        %p124 = scmp.lt.s32.totalorder %s122, 31
        %s125 = scalar_select %p124, %s122, 31
        %p126 = scmp.lt.s32.totalorder %s123, 1
        %s127 = scalar_select %p126, %s123, 1
        %s128 = smul.addr %s125, 2
        %s129 = sadd.s32 %s127, %s128
        %s130 = smul.addr %s129, 8
        %s131 = scalar_lea.vmem %s0, %s130
        %s132 = smul.u32 32, %s19
        %s133 = smul.u32 2, %s20
      $region16: #{_lightgcn_stack_impl.1} parent=11 // pred_fallthru
        _
      // Predicated region
      $region17: #{_lightgcn_stack_impl.1} parent=11 // pred_check
        %p134 = pneg %p76
      $region18: #{_lightgcn_stack_impl.1} parent=11 // pred_check_branch
        %136 = sbr.rel (%p134) target = $region20
      $region19: #{_lightgcn_stack_impl.1} parent=11 // pred_region
        _
      $region20: #{_lightgcn_stack_impl.1} parent=11 // pred_fallthru
        _
    $region12: #{_lightgcn_stack_impl.1} parent=5 // pred_fallthru
      _
    %p137 = scmp.lt.s32.totalorder %s8, 3
    // Predicated region
    $region21: #{_lightgcn_stack_impl.1} parent=5 // pred_check
      %p138 = pneg %p137
    $region22: #{_lightgcn_stack_impl.1} parent=5 // pred_check_branch
      %140 = sbr.rel (%p138) target = $region24
    $region23: #{_lightgcn_stack_impl.1} parent=5 // pred_region
      _
    $region24: #{_lightgcn_stack_impl.1} parent=5 // pred_fallthru
      _
    %p141 = scmp.le.s32.totalorder 1, %s8
    %p142 = scmp.lt.s32.totalorder %s8, 4
    %p143 = pnand %p141, %p142
    %p144 = pneg %p143
    // Predicated region
    $region25: #{_lightgcn_stack_impl.1} parent=5 // pred_check
      _
    $region26: #{_lightgcn_stack_impl.1} parent=5 // pred_check_branch
      %146 = sbr.rel (%p143) target = $region28
    $region27: #{_lightgcn_stack_impl.1} parent=5 // pred_region
      %s147 = ssub.s32 %s8, 1
      %s148 = smul.u32 32, %s19
      %s149 = smul.u32 2, %s20
      %p150 = scmp.lt.s32.totalorder %s148, 31
      %s151 = scalar_select %p150, %s148, 31
      %p152 = scmp.lt.s32.totalorder %s149, 1
      %s153 = scalar_select %p152, %s149, 1
      %s154 = smul.addr %s151, 2
      %s155 = sadd.s32 %s153, %s154
      %s156 = smul.addr %s155, 8
      %s157 = scalar_lea.vmem %s0, %s156
      %p158 = pneg %p55
      %p159 = pneg %p52
      %p160 = pneg %p76
      %p161 = pneg %p73
      %p162 = pneg %p104
      %p163 = pneg %p101
      %s164 = smul.u32 32, %s19
      %p165 = scmp.lt.s32.totalorder %s18, 2
      %s166 = scalar_select %p165, %s18, 2
      %p167 = scmp.lt.s32.totalorder %s164, 31
      %s168 = scalar_select %p167, %s164, 31
      %s169 = smul.addr %s166, 32
      %s170 = sadd.s32 %s168, %s169
      %s171 = smul.addr %s170, 8
      %s172 = scalar_lea.vmem %s2, %s171
      %s173 = smul.u32 32, %s19
      %s174 = smul.u32 2, %s20
      %p175 = scmp.lt.s32.totalorder %s173, 31
      %s176 = scalar_select %p175, %s173, 31
      %p177 = scmp.lt.s32.totalorder %s174, 1
      %s178 = scalar_select %p177, %s174, 1
      %s179 = smul.addr %s176, 2
      %s180 = sadd.s32 %s178, %s179
      %s181 = smul.addr %s180, 8
      %s182 = scalar_lea.vmem %s0, %s181
      %s183 = smul.u32 32, %s19
      %s184 = smul.u32 2, %s20
      %s185 = smul.u32 32, %s19
      %p186 = scmp.lt.s32.totalorder %s18, 2
      %s187 = scalar_select %p186, %s18, 2
      %p188 = scmp.lt.s32.totalorder %s185, 31
      %s189 = scalar_select %p188, %s185, 31
      %s190 = smul.addr %s187, 32
      %s191 = sadd.s32 %s189, %s190
      %s192 = smul.addr %s191, 8
      %s193 = scalar_lea.vmem %s2, %s192
      %s194 = smul.u32 32, %s19
      %p195 = scmp.eq.s32.totalorder %s18, 0
      %p196 = scmp.eq.s32.totalorder %s19, 0
      %p197 = pnand %p195, %p196
      %p198 = pneg %p197
      %p199 = scmp.eq.s32.totalorder %s20, 0
      %p200 = pnand %p198, %p199
      %p201 = pneg %p200
      // Predicated region
      $region29: #{_lightgcn_stack_impl.1} parent=27 // pred_check
        _
      $region30: #{_lightgcn_stack_impl.1} parent=27 // pred_check_branch
        %203 = sbr.rel (%p200) target = $region32
      $region31: #{_lightgcn_stack_impl.1} parent=27 // pred_region
        %v204 = vld [vmem:[%s1] sm:$0xff]
        %v205 = vld [vmem:[%s1 + $0x8] sm:$0xff]
        %v206 = vld [vmem:[%s1 + $0x10] sm:$0xff]
        %v207 = vld [vmem:[%s1 + $0x18] sm:$0xff]
        %v208 = vld [vmem:[%s1 + $0x20] sm:$0xff]
        %v209 = vld [vmem:[%s1 + $0x28] sm:$0xff]
        %v210 = vld [vmem:[%s1 + $0x30] sm:$0xff]
        %v211 = vld [vmem:[%s1 + $0x38] sm:$0xff]
        %v212 = vld [vmem:[%s1 + $0x40] sm:$0xff]
        %v213 = vld [vmem:[%s1 + $0x48] sm:$0xff]
        %v214 = vld [vmem:[%s1 + $0x50] sm:$0xff]
        %v215 = vld [vmem:[%s1 + $0x58] sm:$0xff]
        %v216 = vld [vmem:[%s1 + $0x60] sm:$0xff]
        %v217 = vld [vmem:[%s1 + $0x68] sm:$0xff]
        %v218 = vld [vmem:[%s1 + $0x70] sm:$0xff]
        %v219 = vld [vmem:[%s1 + $0x78] sm:$0xff]
        %v220 = vld [vmem:[%s1 + $0x80] sm:$0xff]
        %v221 = vld [vmem:[%s1 + $0x88] sm:$0xff]
        %v222 = vld [vmem:[%s1 + $0x90] sm:$0xff]
        %v223 = vld [vmem:[%s1 + $0x98] sm:$0xff]
        %v224 = vld [vmem:[%s1 + $0xa0] sm:$0xff]
        %v225 = vld [vmem:[%s1 + $0xa8] sm:$0xff]
        %v226 = vld [vmem:[%s1 + $0xb0] sm:$0xff]
        %v227 = vld [vmem:[%s1 + $0xb8] sm:$0xff]
        %v228 = vld [vmem:[%s1 + $0xc0] sm:$0xff]
        %v229 = vld [vmem:[%s1 + $0xc8] sm:$0xff]
        %v230 = vld [vmem:[%s1 + $0xd0] sm:$0xff]
        %v231 = vld [vmem:[%s1 + $0xd8] sm:$0xff]
        %v232 = vld [vmem:[%s1 + $0xe0] sm:$0xff]
        %v233 = vld [vmem:[%s1 + $0xe8] sm:$0xff]
        %v234 = vld [vmem:[%s1 + $0xf0] sm:$0xff]
        %v235 = vld [vmem:[%s1 + $0xf8] sm:$0xff]
        %236 = vst [vmem:[#allocation2] sm:$0xff] %v204
        %237 = vst [vmem:[#allocation2 + $0x8] sm:$0xff] %v205
        %238 = vst [vmem:[#allocation2 + $0x10] sm:$0xff] %v206
        %239 = vst [vmem:[#allocation2 + $0x18] sm:$0xff] %v207
        %240 = vst [vmem:[#allocation2 + $0x20] sm:$0xff] %v208
        %241 = vst [vmem:[#allocation2 + $0x28] sm:$0xff] %v209
        %242 = vst [vmem:[#allocation2 + $0x30] sm:$0xff] %v210
        %243 = vst [vmem:[#allocation2 + $0x38] sm:$0xff] %v211
        %244 = vst [vmem:[#allocation2 + $0x40] sm:$0xff] %v212
        %245 = vst [vmem:[#allocation2 + $0x48] sm:$0xff] %v213
        %246 = vst [vmem:[#allocation2 + $0x50] sm:$0xff] %v214
        %247 = vst [vmem:[#allocation2 + $0x58] sm:$0xff] %v215
        %248 = vst [vmem:[#allocation2 + $0x60] sm:$0xff] %v216
        %249 = vst [vmem:[#allocation2 + $0x68] sm:$0xff] %v217
        %250 = vst [vmem:[#allocation2 + $0x70] sm:$0xff] %v218
        %251 = vst [vmem:[#allocation2 + $0x78] sm:$0xff] %v219
        %252 = vst [vmem:[#allocation2 + $0x80] sm:$0xff] %v220
        %253 = vst [vmem:[#allocation2 + $0x88] sm:$0xff] %v221
        %254 = vst [vmem:[#allocation2 + $0x90] sm:$0xff] %v222
        %255 = vst [vmem:[#allocation2 + $0x98] sm:$0xff] %v223
        %256 = vst [vmem:[#allocation2 + $0xa0] sm:$0xff] %v224
        %257 = vst [vmem:[#allocation2 + $0xa8] sm:$0xff] %v225
        %258 = vst [vmem:[#allocation2 + $0xb0] sm:$0xff] %v226
        %259 = vst [vmem:[#allocation2 + $0xb8] sm:$0xff] %v227
        %260 = vst [vmem:[#allocation2 + $0xc0] sm:$0xff] %v228
        %261 = vst [vmem:[#allocation2 + $0xc8] sm:$0xff] %v229
        %262 = vst [vmem:[#allocation2 + $0xd0] sm:$0xff] %v230
        %263 = vst [vmem:[#allocation2 + $0xd8] sm:$0xff] %v231
        %264 = vst [vmem:[#allocation2 + $0xe0] sm:$0xff] %v232
        %265 = vst [vmem:[#allocation2 + $0xe8] sm:$0xff] %v233
        %266 = vst [vmem:[#allocation2 + $0xf0] sm:$0xff] %v234
        %267 = vst [vmem:[#allocation2 + $0xf8] sm:$0xff] %v235
      $region32: #{_lightgcn_stack_impl.1} parent=27 // pred_fallthru
        _
      %p268 = scmp.lt.s32.totalorder %s18, 0
      %s269 = ssub.s32 0, %s18
      %s270 = scalar_select %p268, %s269, %s18
      %s271 = sand.u32 %s270, 1
      %s272 = ssub.s32 0, %s271
      %s273 = scalar_select %p268, %s272, %s271
      %p274 = scmp.ne.s32.totalorder %s273, 0
      %p275 = scmp.lt.s32.totalorder %s273, 0
      %p276 = pnand %p275, %p274
      %p277 = pneg %p276
      %s278 = sadd.s32 %s273, 2
      %s279 = scalar_select %p277, %s278, %s273
      %s280 = ssub.s32 1, %s279
      %s281 = smul.u32 %s19, 256
      %s282 = smul.u32 %s20, 256
      // Predicated region
      $region33: #{_lightgcn_stack_impl.1} parent=27 // pred_check
        %p283 = pneg %p199
      $region34: #{_lightgcn_stack_impl.1} parent=27 // pred_check_branch
        %285 = sbr.rel (%p283) target = $region36
      $region35: #{_lightgcn_stack_impl.1} parent=27 // pred_region
        %s286 = smul.u32 %s279, 256
        %s287 = sadd.s32 %s281, %s286
        %s288 = scalar_lea.vmem [#allocation2], %s287
        %v289 = vld [vmem:[%s288] sm:$0xff]
        %v290 = vld [vmem:[%s288 + $0x8] sm:$0xff]
        %v291 = vld [vmem:[%s288 + $0x10] sm:$0xff]
        %v292 = vld [vmem:[%s288 + $0x18] sm:$0xff]
        %v293 = vld [vmem:[%s288 + $0x20] sm:$0xff]
        %v294 = vld [vmem:[%s288 + $0x28] sm:$0xff]
        %v295 = vld [vmem:[%s288 + $0x30] sm:$0xff]
        %v296 = vld [vmem:[%s288 + $0x38] sm:$0xff]
        %v297 = vld [vmem:[%s288 + $0x40] sm:$0xff]
        %v298 = vld [vmem:[%s288 + $0x48] sm:$0xff]
        %v299 = vld [vmem:[%s288 + $0x50] sm:$0xff]
        %v300 = vld [vmem:[%s288 + $0x58] sm:$0xff]
        %v301 = vld [vmem:[%s288 + $0x60] sm:$0xff]
        %v302 = vld [vmem:[%s288 + $0x68] sm:$0xff]
        %v303 = vld [vmem:[%s288 + $0x70] sm:$0xff]
        %v304 = vld [vmem:[%s288 + $0x78] sm:$0xff]
        %v305 = vld [vmem:[%s288 + $0x80] sm:$0xff]
        %v306 = vld [vmem:[%s288 + $0x88] sm:$0xff]
        %v307 = vld [vmem:[%s288 + $0x90] sm:$0xff]
        %v308 = vld [vmem:[%s288 + $0x98] sm:$0xff]
        %v309 = vld [vmem:[%s288 + $0xa0] sm:$0xff]
        %v310 = vld [vmem:[%s288 + $0xa8] sm:$0xff]
        %v311 = vld [vmem:[%s288 + $0xb0] sm:$0xff]
        %v312 = vld [vmem:[%s288 + $0xb8] sm:$0xff]
        %v313 = vld [vmem:[%s288 + $0xc0] sm:$0xff]
        %v314 = vld [vmem:[%s288 + $0xc8] sm:$0xff]
        %v315 = vld [vmem:[%s288 + $0xd0] sm:$0xff]
        %v316 = vld [vmem:[%s288 + $0xd8] sm:$0xff]
        %v317 = vld [vmem:[%s288 + $0xe0] sm:$0xff]
        %v318 = vld [vmem:[%s288 + $0xe8] sm:$0xff]
        %v319 = vld [vmem:[%s288 + $0xf0] sm:$0xff]
        %v320 = vld [vmem:[%s288 + $0xf8] sm:$0xff]
        %321 = vst [vmem:[%s193] sm:$0xff] %v289
        %322 = vst [vmem:[%s193 + $0x8] sm:$0xff] %v290
        %323 = vst [vmem:[%s193 + $0x10] sm:$0xff] %v291
        %324 = vst [vmem:[%s193 + $0x18] sm:$0xff] %v292
        %325 = vst [vmem:[%s193 + $0x20] sm:$0xff] %v293
        %326 = vst [vmem:[%s193 + $0x28] sm:$0xff] %v294
        %327 = vst [vmem:[%s193 + $0x30] sm:$0xff] %v295
        %328 = vst [vmem:[%s193 + $0x38] sm:$0xff] %v296
        %329 = vst [vmem:[%s193 + $0x40] sm:$0xff] %v297
        %330 = vst [vmem:[%s193 + $0x48] sm:$0xff] %v298
        %331 = vst [vmem:[%s193 + $0x50] sm:$0xff] %v299
        %332 = vst [vmem:[%s193 + $0x58] sm:$0xff] %v300
        %333 = vst [vmem:[%s193 + $0x60] sm:$0xff] %v301
        %334 = vst [vmem:[%s193 + $0x68] sm:$0xff] %v302
        %335 = vst [vmem:[%s193 + $0x70] sm:$0xff] %v303
        %336 = vst [vmem:[%s193 + $0x78] sm:$0xff] %v304
        %337 = vst [vmem:[%s193 + $0x80] sm:$0xff] %v305
        %338 = vst [vmem:[%s193 + $0x88] sm:$0xff] %v306
        %339 = vst [vmem:[%s193 + $0x90] sm:$0xff] %v307
        %340 = vst [vmem:[%s193 + $0x98] sm:$0xff] %v308
        %341 = vst [vmem:[%s193 + $0xa0] sm:$0xff] %v309
        %342 = vst [vmem:[%s193 + $0xa8] sm:$0xff] %v310
        %343 = vst [vmem:[%s193 + $0xb0] sm:$0xff] %v311
        %344 = vst [vmem:[%s193 + $0xb8] sm:$0xff] %v312
        %345 = vst [vmem:[%s193 + $0xc0] sm:$0xff] %v313
        %346 = vst [vmem:[%s193 + $0xc8] sm:$0xff] %v314
        %347 = vst [vmem:[%s193 + $0xd0] sm:$0xff] %v315
        %348 = vst [vmem:[%s193 + $0xd8] sm:$0xff] %v316
        %349 = vst [vmem:[%s193 + $0xe0] sm:$0xff] %v317
        %350 = vst [vmem:[%s193 + $0xe8] sm:$0xff] %v318
        %351 = vst [vmem:[%s193 + $0xf0] sm:$0xff] %v319
        %352 = vst [vmem:[%s193 + $0xf8] sm:$0xff] %v320
      $region36: #{_lightgcn_stack_impl.1} parent=27 // pred_fallthru
        _
      %v353 = vld [vmem:[%s182] sm:$0xff]
      %v354 = vld [vmem:[%s182 + $0x8] sm:$0xff]
      %v355 = vld [vmem:[%s182 + $0x10] sm:$0xff]
      %v356 = vld [vmem:[%s182 + $0x18] sm:$0xff]
      %v357 = vld [vmem:[%s182 + $0x20] sm:$0xff]
      %v358 = vld [vmem:[%s182 + $0x28] sm:$0xff]
      %v359 = vld [vmem:[%s182 + $0x30] sm:$0xff]
      %v360 = vld [vmem:[%s182 + $0x38] sm:$0xff]
      %v361 = vld [vmem:[%s182 + $0x40] sm:$0xff]
      %v362 = vld [vmem:[%s182 + $0x48] sm:$0xff]
      %v363 = vld [vmem:[%s182 + $0x50] sm:$0xff]
      %v364 = vld [vmem:[%s182 + $0x58] sm:$0xff]
      %v365 = vld [vmem:[%s182 + $0x60] sm:$0xff]
      %v366 = vld [vmem:[%s182 + $0x68] sm:$0xff]
      %v367 = vld [vmem:[%s182 + $0x70] sm:$0xff]
      %v368 = vld [vmem:[%s182 + $0x78] sm:$0xff]
      %v369 = vld [vmem:[%s182 + $0x80] sm:$0xff]
      %v370 = vld [vmem:[%s182 + $0x88] sm:$0xff]
      %v371 = vld [vmem:[%s182 + $0x90] sm:$0xff]
      %v372 = vld [vmem:[%s182 + $0x98] sm:$0xff]
      %v373 = vld [vmem:[%s182 + $0xa0] sm:$0xff]
      %v374 = vld [vmem:[%s182 + $0xa8] sm:$0xff]
      %v375 = vld [vmem:[%s182 + $0xb0] sm:$0xff]
      %v376 = vld [vmem:[%s182 + $0xb8] sm:$0xff]
      %v377 = vld [vmem:[%s182 + $0xc0] sm:$0xff]
      %v378 = vld [vmem:[%s182 + $0xc8] sm:$0xff]
      %v379 = vld [vmem:[%s182 + $0xd0] sm:$0xff]
      %v380 = vld [vmem:[%s182 + $0xd8] sm:$0xff]
      %v381 = vld [vmem:[%s182 + $0xe0] sm:$0xff]
      %v382 = vld [vmem:[%s182 + $0xe8] sm:$0xff]
      %v383 = vld [vmem:[%s182 + $0xf0] sm:$0xff]
      %v384 = vld [vmem:[%s182 + $0xf8] sm:$0xff]
      %v385 = vld [vmem:[%s182 + $0x100] sm:$0xff]
      %v386 = vld [vmem:[%s182 + $0x108] sm:$0xff]
      %v387 = vld [vmem:[%s182 + $0x110] sm:$0xff]
      %v388 = vld [vmem:[%s182 + $0x118] sm:$0xff]
      %v389 = vld [vmem:[%s182 + $0x120] sm:$0xff]
      %v390 = vld [vmem:[%s182 + $0x128] sm:$0xff]
      %v391 = vld [vmem:[%s182 + $0x130] sm:$0xff]
      %v392 = vld [vmem:[%s182 + $0x138] sm:$0xff]
      %v393 = vld [vmem:[%s182 + $0x140] sm:$0xff]
      %v394 = vld [vmem:[%s182 + $0x148] sm:$0xff]
      %v395 = vld [vmem:[%s182 + $0x150] sm:$0xff]
      %v396 = vld [vmem:[%s182 + $0x158] sm:$0xff]
      %v397 = vld [vmem:[%s182 + $0x160] sm:$0xff]
      %v398 = vld [vmem:[%s182 + $0x168] sm:$0xff]
      %v399 = vld [vmem:[%s182 + $0x170] sm:$0xff]
      %v400 = vld [vmem:[%s182 + $0x178] sm:$0xff]
      %v401 = vld [vmem:[%s182 + $0x180] sm:$0xff]
      %v402 = vld [vmem:[%s182 + $0x188] sm:$0xff]
      %v403 = vld [vmem:[%s182 + $0x190] sm:$0xff]
      %v404 = vld [vmem:[%s182 + $0x198] sm:$0xff]
      %v405 = vld [vmem:[%s182 + $0x1a0] sm:$0xff]
      %v406 = vld [vmem:[%s182 + $0x1a8] sm:$0xff]
      %v407 = vld [vmem:[%s182 + $0x1b0] sm:$0xff]
      %v408 = vld [vmem:[%s182 + $0x1b8] sm:$0xff]
      %v409 = vld [vmem:[%s182 + $0x1c0] sm:$0xff]
      %v410 = vld [vmem:[%s182 + $0x1c8] sm:$0xff]
      %v411 = vld [vmem:[%s182 + $0x1d0] sm:$0xff]
      %v412 = vld [vmem:[%s182 + $0x1d8] sm:$0xff]
      %v413 = vld [vmem:[%s182 + $0x1e0] sm:$0xff]
      %v414 = vld [vmem:[%s182 + $0x1e8] sm:$0xff]
      %v415 = vld [vmem:[%s182 + $0x1f0] sm:$0xff]
      %v416 = vld [vmem:[%s182 + $0x1f8] sm:$0xff]
      %s417 = smul.u32 %s279, 256
      %s418 = sadd.s32 %s282, %s417
      %s419 = scalar_lea.vmem [#allocation2], %s418
      %v420 = vld [vmem:[%s419] sm:$0xff]
      %v421 = vld [vmem:[%s419 + $0x8] sm:$0xff]
      %v422 = vld [vmem:[%s419 + $0x10] sm:$0xff]
      %v423 = vld [vmem:[%s419 + $0x18] sm:$0xff]
      %v424 = vld [vmem:[%s419 + $0x20] sm:$0xff]
      %v425 = vld [vmem:[%s419 + $0x28] sm:$0xff]
      %v426 = vld [vmem:[%s419 + $0x30] sm:$0xff]
      %v427 = vld [vmem:[%s419 + $0x38] sm:$0xff]
      %v428 = vld [vmem:[%s419 + $0x40] sm:$0xff]
      %v429 = vld [vmem:[%s419 + $0x48] sm:$0xff]
      %v430 = vld [vmem:[%s419 + $0x50] sm:$0xff]
      %v431 = vld [vmem:[%s419 + $0x58] sm:$0xff]
      %v432 = vld [vmem:[%s419 + $0x60] sm:$0xff]
      %v433 = vld [vmem:[%s419 + $0x68] sm:$0xff]
      %v434 = vld [vmem:[%s419 + $0x70] sm:$0xff]
      %v435 = vld [vmem:[%s419 + $0x78] sm:$0xff]
      %v436 = vld [vmem:[%s419 + $0x80] sm:$0xff]
      %v437 = vld [vmem:[%s419 + $0x88] sm:$0xff]
      %v438 = vld [vmem:[%s419 + $0x90] sm:$0xff]
      %v439 = vld [vmem:[%s419 + $0x98] sm:$0xff]
      %v440 = vld [vmem:[%s419 + $0xa0] sm:$0xff]
      %v441 = vld [vmem:[%s419 + $0xa8] sm:$0xff]
      %v442 = vld [vmem:[%s419 + $0xb0] sm:$0xff]
      %v443 = vld [vmem:[%s419 + $0xb8] sm:$0xff]
      %v444 = vld [vmem:[%s419 + $0xc0] sm:$0xff]
      %v445 = vld [vmem:[%s419 + $0xc8] sm:$0xff]
      %v446 = vld [vmem:[%s419 + $0xd0] sm:$0xff]
      %v447 = vld [vmem:[%s419 + $0xd8] sm:$0xff]
      %v448 = vld [vmem:[%s419 + $0xe0] sm:$0xff]
      %v449 = vld [vmem:[%s419 + $0xe8] sm:$0xff]
      %v450 = vld [vmem:[%s419 + $0xf0] sm:$0xff]
      %v451 = vld [vmem:[%s419 + $0xf8] sm:$0xff]
      %v452 = vld [vmem:[%s193] sm:$0xff]
      %v453 = vld [vmem:[%s193 + $0x8] sm:$0xff]
      %v454 = vld [vmem:[%s193 + $0x10] sm:$0xff]
      %v455 = vld [vmem:[%s193 + $0x18] sm:$0xff]
      %v456 = vld [vmem:[%s193 + $0x20] sm:$0xff]
      %v457 = vld [vmem:[%s193 + $0x28] sm:$0xff]
      %v458 = vld [vmem:[%s193 + $0x30] sm:$0xff]
      %v459 = vld [vmem:[%s193 + $0x38] sm:$0xff]
      %v460 = vld [vmem:[%s193 + $0x40] sm:$0xff]
      %v461 = vld [vmem:[%s193 + $0x48] sm:$0xff]
      %v462 = vld [vmem:[%s193 + $0x50] sm:$0xff]
      %v463 = vld [vmem:[%s193 + $0x58] sm:$0xff]
      %v464 = vld [vmem:[%s193 + $0x60] sm:$0xff]
      %v465 = vld [vmem:[%s193 + $0x68] sm:$0xff]
      %v466 = vld [vmem:[%s193 + $0x70] sm:$0xff]
      %v467 = vld [vmem:[%s193 + $0x78] sm:$0xff]
      %v468 = vld [vmem:[%s193 + $0x80] sm:$0xff]
      %v469 = vld [vmem:[%s193 + $0x88] sm:$0xff]
      %v470 = vld [vmem:[%s193 + $0x90] sm:$0xff]
      %v471 = vld [vmem:[%s193 + $0x98] sm:$0xff]
      %v472 = vld [vmem:[%s193 + $0xa0] sm:$0xff]
      %v473 = vld [vmem:[%s193 + $0xa8] sm:$0xff]
      %v474 = vld [vmem:[%s193 + $0xb0] sm:$0xff]
      %v475 = vld [vmem:[%s193 + $0xb8] sm:$0xff]
      %v476 = vld [vmem:[%s193 + $0xc0] sm:$0xff]
      %v477 = vld [vmem:[%s193 + $0xc8] sm:$0xff]
      %v478 = vld [vmem:[%s193 + $0xd0] sm:$0xff]
      %v479 = vld [vmem:[%s193 + $0xd8] sm:$0xff]
      %v480 = vld [vmem:[%s193 + $0xe0] sm:$0xff]
      %v481 = vld [vmem:[%s193 + $0xe8] sm:$0xff]
      %v482 = vld [vmem:[%s193 + $0xf0] sm:$0xff]
      %v483 = vld [vmem:[%s193 + $0xf8] sm:$0xff]
      %484 = vmatprep.subr.mxu0 0.0
      %485 = vmatpush1.msra.mxu0 %v435
      %486 = vmatprep.subr.mxu0 0.0
      %487 = vmatpush1.msra.mxu0 %v434
      %488 = vmatprep.subr.mxu0 0.0
      %489 = vmatpush1.msra.mxu0 %v433
      %490 = vmatprep.subr.mxu0 0.0
      %491 = vmatpush1.msra.mxu0 %v432
      %492 = vmatprep.subr.mxu0 0.0
      %493 = vmatpush1.msra.mxu0 %v431
      %494 = vmatprep.subr.mxu0 0.0
      %495 = vmatpush1.msra.mxu0 %v430
      %496 = vmatprep.subr.mxu0 0.0
      %497 = vmatpush1.msra.mxu0 %v429
      %498 = vmatprep.subr.mxu0 0.0
      %499 = vmatpush1.msra.mxu0 %v428
      %500 = vmatprep.subr.mxu0 0.0
      %501 = vmatpush1.msra.mxu0 %v427
      %502 = vmatprep.subr.mxu0 0.0
      %503 = vmatpush1.msra.mxu0 %v426
      %504 = vmatprep.subr.mxu0 0.0
      %505 = vmatpush1.msra.mxu0 %v425
      %506 = vmatprep.subr.mxu0 0.0
      %507 = vmatpush1.msra.mxu0 %v424
      %508 = vmatprep.subr.mxu0 0.0
      %509 = vmatpush1.msra.mxu0 %v423
      %510 = vmatprep.subr.mxu0 0.0
      %511 = vmatpush1.msra.mxu0 %v422
      %512 = vmatprep.subr.mxu0 0.0
      %513 = vmatpush1.msra.mxu0 %v421
      %514 = vmatprep.subr.mxu0 0.0
      %515 = vmatpush1.msra.mxu0 %v420
      %516 = vmatprep.subr.mxu0 0.0
      %517 = vmatpush2.msra.mxu0 %v451
      %518 = vmatprep.subr.mxu0 0.0
      %519 = vmatpush2.msra.mxu0 %v450
      %520 = vmatprep.subr.mxu0 0.0
      %521 = vmatpush2.msra.mxu0 %v449
      %522 = vmatprep.subr.mxu0 0.0
      %523 = vmatpush2.msra.mxu0 %v448
      %524 = vmatprep.subr.mxu0 0.0
      %525 = vmatpush2.msra.mxu0 %v447
      %526 = vmatprep.subr.mxu0 0.0
      %527 = vmatpush2.msra.mxu0 %v446
      %528 = vmatprep.subr.mxu0 0.0
      %529 = vmatpush2.msra.mxu0 %v445
      %530 = vmatprep.subr.mxu0 0.0
      %531 = vmatpush2.msra.mxu0 %v444
      %532 = vmatprep.subr.mxu0 0.0
      %533 = vmatpush2.msra.mxu0 %v443
      %534 = vmatprep.subr.mxu0 0.0
      %535 = vmatpush2.msra.mxu0 %v442
      %536 = vmatprep.subr.mxu0 0.0
      %537 = vmatpush2.msra.mxu0 %v441
      %538 = vmatprep.subr.mxu0 0.0
      %539 = vmatpush2.msra.mxu0 %v440
      %540 = vmatprep.subr.mxu0 0.0
      %541 = vmatpush2.msra.mxu0 %v439
      %542 = vmatprep.subr.mxu0 0.0
      %543 = vmatpush2.msra.mxu0 %v438
      %544 = vmatprep.subr.mxu0 0.0
      %545 = vmatpush2.msra.mxu0 %v437
      %546 = vmatprep.subr.mxu0 0.0
      %547 = vmatpush2.msra.mxu0 %v436
      %548 = vmatprep.mubr.f32.mxu0 %v354
      %549 = vmatmul.mubr.f32.gmra.mxu0 %v353
      %v550 = vpop.f32.mrf.mxu0
      %v551 = vadd.f32 0.0, %v550
      %v552 = vpop.f32.mrf.mxu0
      %553 = vmatprep.mubr.f32.mxu0 %v356
      %554 = vmatmul.mubr.f32.gmra.mxu0 %v355
      %v555 = vpop.f32.mrf.mxu0
      %v556 = vadd.f32 0.0, %v555
      %v557 = vpop.f32.mrf.mxu0
      %558 = vmatprep.mubr.f32.mxu0 %v358
      %559 = vmatmul.mubr.f32.gmra.mxu0 %v357
      %v560 = vpop.f32.mrf.mxu0
      %v561 = vadd.f32 0.0, %v560
      %v562 = vpop.f32.mrf.mxu0
      %563 = vmatprep.mubr.f32.mxu0 %v360
      %564 = vmatmul.mubr.f32.gmra.mxu0 %v359
      %v565 = vpop.f32.mrf.mxu0
      %v566 = vadd.f32 0.0, %v565
      %v567 = vpop.f32.mrf.mxu0
      %568 = vmatprep.mubr.f32.mxu0 %v362
      %569 = vmatmul.mubr.f32.gmra.mxu0 %v361
      %v570 = vpop.f32.mrf.mxu0
      %v571 = vadd.f32 0.0, %v570
      %v572 = vpop.f32.mrf.mxu0
      %573 = vmatprep.mubr.f32.mxu0 %v364
      %574 = vmatmul.mubr.f32.gmra.mxu0 %v363
      %v575 = vpop.f32.mrf.mxu0
      %v576 = vadd.f32 0.0, %v575
      %v577 = vpop.f32.mrf.mxu0
      %578 = vmatprep.mubr.f32.mxu0 %v366
      %579 = vmatmul.mubr.f32.gmra.mxu0 %v365
      %v580 = vpop.f32.mrf.mxu0
      %v581 = vadd.f32 0.0, %v580
      %v582 = vpop.f32.mrf.mxu0
      %583 = vmatprep.mubr.f32.mxu0 %v368
      %584 = vmatmul.mubr.f32.gmra.mxu0 %v367
      %v585 = vpop.f32.mrf.mxu0
      %v586 = vadd.f32 0.0, %v585
      %v587 = vpop.f32.mrf.mxu0
      %588 = vmatprep.mubr.f32.mxu0 %v370
      %589 = vmatmul.mubr.f32.gmra.mxu0 %v369
      %v590 = vpop.f32.mrf.mxu0
      %v591 = vadd.f32 0.0, %v590
      %v592 = vpop.f32.mrf.mxu0
      %593 = vmatprep.mubr.f32.mxu0 %v372
      %594 = vmatmul.mubr.f32.gmra.mxu0 %v371
      %v595 = vpop.f32.mrf.mxu0
      %v596 = vadd.f32 0.0, %v595
      %v597 = vpop.f32.mrf.mxu0
      %598 = vmatprep.mubr.f32.mxu0 %v374
      %599 = vmatmul.mubr.f32.gmra.mxu0 %v373
      %v600 = vpop.f32.mrf.mxu0
      %v601 = vadd.f32 0.0, %v600
      %v602 = vpop.f32.mrf.mxu0
      %603 = vmatprep.mubr.f32.mxu0 %v376
      %604 = vmatmul.mubr.f32.gmra.mxu0 %v375
      %v605 = vpop.f32.mrf.mxu0
      %v606 = vadd.f32 0.0, %v605
      %v607 = vpop.f32.mrf.mxu0
      %608 = vmatprep.mubr.f32.mxu0 %v378
      %609 = vmatmul.mubr.f32.gmra.mxu0 %v377
      %v610 = vpop.f32.mrf.mxu0
      %v611 = vadd.f32 0.0, %v610
      %v612 = vpop.f32.mrf.mxu0
      %613 = vmatprep.mubr.f32.mxu0 %v380
      %614 = vmatmul.mubr.f32.gmra.mxu0 %v379
      %v615 = vpop.f32.mrf.mxu0
      %v616 = vadd.f32 0.0, %v615
      %v617 = vpop.f32.mrf.mxu0
      %618 = vmatprep.mubr.f32.mxu0 %v382
      %619 = vmatmul.mubr.f32.gmra.mxu0 %v381
      %v620 = vpop.f32.mrf.mxu0
      %v621 = vadd.f32 0.0, %v620
      %v622 = vpop.f32.mrf.mxu0
      %623 = vmatprep.mubr.f32.mxu0 %v384
      %624 = vmatmul.mubr.f32.gmra.mxu0 %v383
      %v625 = vpop.f32.mrf.mxu0
      %v626 = vadd.f32 0.0, %v625
      %v627 = vpop.f32.mrf.mxu0
      %628 = vmatprep.mubr.f32.mxu0 %v386
      %629 = vmatmul.mubr.f32.gmra.mxu0 %v385
      %v630 = vpop.f32.mrf.mxu0
      %v631 = vadd.f32 0.0, %v630
      %v632 = vpop.f32.mrf.mxu0
      %633 = vmatprep.mubr.f32.mxu0 %v388
      %634 = vmatmul.mubr.f32.gmra.mxu0 %v387
      %v635 = vpop.f32.mrf.mxu0
      %v636 = vadd.f32 0.0, %v635
      %v637 = vpop.f32.mrf.mxu0
      %638 = vmatprep.mubr.f32.mxu0 %v390
      %639 = vmatmul.mubr.f32.gmra.mxu0 %v389
      %v640 = vpop.f32.mrf.mxu0
      %v641 = vadd.f32 0.0, %v640
      %v642 = vpop.f32.mrf.mxu0
      %643 = vmatprep.mubr.f32.mxu0 %v392
      %644 = vmatmul.mubr.f32.gmra.mxu0 %v391
      %v645 = vpop.f32.mrf.mxu0
      %v646 = vadd.f32 0.0, %v645
      %v647 = vpop.f32.mrf.mxu0
      %648 = vmatprep.mubr.f32.mxu0 %v394
      %649 = vmatmul.mubr.f32.gmra.mxu0 %v393
      %v650 = vpop.f32.mrf.mxu0
      %v651 = vadd.f32 0.0, %v650
      %v652 = vpop.f32.mrf.mxu0
      %653 = vmatprep.mubr.f32.mxu0 %v396
      %654 = vmatmul.mubr.f32.gmra.mxu0 %v395
      %v655 = vpop.f32.mrf.mxu0
      %v656 = vadd.f32 0.0, %v655
      %v657 = vpop.f32.mrf.mxu0
      %658 = vmatprep.mubr.f32.mxu0 %v398
      %659 = vmatmul.mubr.f32.gmra.mxu0 %v397
      %v660 = vpop.f32.mrf.mxu0
      %v661 = vadd.f32 0.0, %v660
      %v662 = vpop.f32.mrf.mxu0
      %663 = vmatprep.mubr.f32.mxu0 %v400
      %664 = vmatmul.mubr.f32.gmra.mxu0 %v399
      %v665 = vpop.f32.mrf.mxu0
      %v666 = vadd.f32 0.0, %v665
      %v667 = vpop.f32.mrf.mxu0
      %668 = vmatprep.mubr.f32.mxu0 %v402
      %669 = vmatmul.mubr.f32.gmra.mxu0 %v401
      %v670 = vpop.f32.mrf.mxu0
      %v671 = vadd.f32 0.0, %v670
      %v672 = vpop.f32.mrf.mxu0
      %673 = vmatprep.mubr.f32.mxu0 %v404
      %674 = vmatmul.mubr.f32.gmra.mxu0 %v403
      %v675 = vpop.f32.mrf.mxu0
      %v676 = vadd.f32 0.0, %v675
      %v677 = vpop.f32.mrf.mxu0
      %678 = vmatprep.mubr.f32.mxu0 %v406
      %679 = vmatmul.mubr.f32.gmra.mxu0 %v405
      %v680 = vpop.f32.mrf.mxu0
      %v681 = vadd.f32 0.0, %v680
      %v682 = vpop.f32.mrf.mxu0
      %683 = vmatprep.mubr.f32.mxu0 %v408
      %684 = vmatmul.mubr.f32.gmra.mxu0 %v407
      %v685 = vpop.f32.mrf.mxu0
      %v686 = vadd.f32 0.0, %v685
      %v687 = vpop.f32.mrf.mxu0
      %688 = vmatprep.mubr.f32.mxu0 %v410
      %689 = vmatmul.mubr.f32.gmra.mxu0 %v409
      %v690 = vpop.f32.mrf.mxu0
      %v691 = vadd.f32 0.0, %v690
      %v692 = vpop.f32.mrf.mxu0
      %693 = vmatprep.mubr.f32.mxu0 %v412
      %694 = vmatmul.mubr.f32.gmra.mxu0 %v411
      %v695 = vpop.f32.mrf.mxu0
      %v696 = vadd.f32 0.0, %v695
      %v697 = vpop.f32.mrf.mxu0
      %698 = vmatprep.mubr.f32.mxu0 %v414
      %699 = vmatmul.mubr.f32.gmra.mxu0 %v413
      %v700 = vpop.f32.mrf.mxu0
      %v701 = vadd.f32 0.0, %v700
      %v702 = vpop.f32.mrf.mxu0
      %703 = vmatprep.mubr.f32.mxu0 %v416
      %704 = vmatmul.mubr.f32.gmra.mxu0 %v415
      %v705 = vpop.f32.mrf.mxu0
      %v706 = vadd.f32 0.0, %v705
      %v707 = vpop.f32.mrf.mxu0
      %708 = vdwg.mxu0
      %v709 = vadd.f32 %v452, %v551
      %v710 = vadd.f32 %v453, %v556
      %v711 = vadd.f32 %v454, %v561
      %v712 = vadd.f32 %v455, %v566
      %v713 = vadd.f32 %v456, %v571
      %v714 = vadd.f32 %v457, %v576
      %v715 = vadd.f32 %v458, %v581
      %v716 = vadd.f32 %v459, %v586
      %v717 = vadd.f32 %v460, %v591
      %v718 = vadd.f32 %v461, %v596
      %v719 = vadd.f32 %v462, %v601
      %v720 = vadd.f32 %v463, %v606
      %v721 = vadd.f32 %v464, %v611
      %v722 = vadd.f32 %v465, %v616
      %v723 = vadd.f32 %v466, %v621
      %v724 = vadd.f32 %v467, %v626
      %v725 = vadd.f32 %v468, %v631
      %v726 = vadd.f32 %v469, %v636
      %v727 = vadd.f32 %v470, %v641
      %v728 = vadd.f32 %v471, %v646
      %v729 = vadd.f32 %v472, %v651
      %v730 = vadd.f32 %v473, %v656
      %v731 = vadd.f32 %v474, %v661
      %v732 = vadd.f32 %v475, %v666
      %v733 = vadd.f32 %v476, %v671
      %v734 = vadd.f32 %v477, %v676
      %v735 = vadd.f32 %v478, %v681
      %v736 = vadd.f32 %v479, %v686
      %v737 = vadd.f32 %v480, %v691
      %v738 = vadd.f32 %v481, %v696
      %v739 = vadd.f32 %v482, %v701
      %v740 = vadd.f32 %v483, %v706
      %741 = vst [vmem:[%s193] sm:$0xff] %v709
      %742 = vst [vmem:[%s193 + $0x8] sm:$0xff] %v710
      %743 = vst [vmem:[%s193 + $0x10] sm:$0xff] %v711
      %744 = vst [vmem:[%s193 + $0x18] sm:$0xff] %v712
      %745 = vst [vmem:[%s193 + $0x20] sm:$0xff] %v713
      %746 = vst [vmem:[%s193 + $0x28] sm:$0xff] %v714
      %747 = vst [vmem:[%s193 + $0x30] sm:$0xff] %v715
      %748 = vst [vmem:[%s193 + $0x38] sm:$0xff] %v716
      %749 = vst [vmem:[%s193 + $0x40] sm:$0xff] %v717
      %750 = vst [vmem:[%s193 + $0x48] sm:$0xff] %v718
      %751 = vst [vmem:[%s193 + $0x50] sm:$0xff] %v719
      %752 = vst [vmem:[%s193 + $0x58] sm:$0xff] %v720
      %753 = vst [vmem:[%s193 + $0x60] sm:$0xff] %v721
      %754 = vst [vmem:[%s193 + $0x68] sm:$0xff] %v722
      %755 = vst [vmem:[%s193 + $0x70] sm:$0xff] %v723
      %756 = vst [vmem:[%s193 + $0x78] sm:$0xff] %v724
      %757 = vst [vmem:[%s193 + $0x80] sm:$0xff] %v725
      %758 = vst [vmem:[%s193 + $0x88] sm:$0xff] %v726
      %759 = vst [vmem:[%s193 + $0x90] sm:$0xff] %v727
      %760 = vst [vmem:[%s193 + $0x98] sm:$0xff] %v728
      %761 = vst [vmem:[%s193 + $0xa0] sm:$0xff] %v729
      %762 = vst [vmem:[%s193 + $0xa8] sm:$0xff] %v730
      %763 = vst [vmem:[%s193 + $0xb0] sm:$0xff] %v731
      %764 = vst [vmem:[%s193 + $0xb8] sm:$0xff] %v732
      %765 = vst [vmem:[%s193 + $0xc0] sm:$0xff] %v733
      %766 = vst [vmem:[%s193 + $0xc8] sm:$0xff] %v734
      %767 = vst [vmem:[%s193 + $0xd0] sm:$0xff] %v735
      %768 = vst [vmem:[%s193 + $0xd8] sm:$0xff] %v736
      %769 = vst [vmem:[%s193 + $0xe0] sm:$0xff] %v737
      %770 = vst [vmem:[%s193 + $0xe8] sm:$0xff] %v738
      %771 = vst [vmem:[%s193 + $0xf0] sm:$0xff] %v739
      %772 = vst [vmem:[%s193 + $0xf8] sm:$0xff] %v740
      %s773 = sadd.s32 %s18, 1
      %p774 = scmp.lt.s32.totalorder %s773, 3
      %p775 = pnand %p199, %p774
      %p776 = pneg %p775
      // Predicated region
      $region37: #{_lightgcn_stack_impl.1} parent=27 // pred_check
        _
      $region38: #{_lightgcn_stack_impl.1} parent=27 // pred_check_branch
        %778 = sbr.rel (%p775) target = $region40
      $region39: #{_lightgcn_stack_impl.1} parent=27 // pred_region
        %v779 = vld [vmem:[%s193] sm:$0xff]
        %v780 = vld [vmem:[%s193 + $0x8] sm:$0xff]
        %v781 = vld [vmem:[%s193 + $0x10] sm:$0xff]
        %v782 = vld [vmem:[%s193 + $0x18] sm:$0xff]
        %v783 = vld [vmem:[%s193 + $0x20] sm:$0xff]
        %v784 = vld [vmem:[%s193 + $0x28] sm:$0xff]
        %v785 = vld [vmem:[%s193 + $0x30] sm:$0xff]
        %v786 = vld [vmem:[%s193 + $0x38] sm:$0xff]
        %v787 = vld [vmem:[%s193 + $0x40] sm:$0xff]
        %v788 = vld [vmem:[%s193 + $0x48] sm:$0xff]
        %v789 = vld [vmem:[%s193 + $0x50] sm:$0xff]
        %v790 = vld [vmem:[%s193 + $0x58] sm:$0xff]
        %v791 = vld [vmem:[%s193 + $0x60] sm:$0xff]
        %v792 = vld [vmem:[%s193 + $0x68] sm:$0xff]
        %v793 = vld [vmem:[%s193 + $0x70] sm:$0xff]
        %v794 = vld [vmem:[%s193 + $0x78] sm:$0xff]
        %v795 = vld [vmem:[%s193 + $0x80] sm:$0xff]
        %v796 = vld [vmem:[%s193 + $0x88] sm:$0xff]
        %v797 = vld [vmem:[%s193 + $0x90] sm:$0xff]
        %v798 = vld [vmem:[%s193 + $0x98] sm:$0xff]
        %v799 = vld [vmem:[%s193 + $0xa0] sm:$0xff]
        %v800 = vld [vmem:[%s193 + $0xa8] sm:$0xff]
        %v801 = vld [vmem:[%s193 + $0xb0] sm:$0xff]
        %v802 = vld [vmem:[%s193 + $0xb8] sm:$0xff]
        %v803 = vld [vmem:[%s193 + $0xc0] sm:$0xff]
        %v804 = vld [vmem:[%s193 + $0xc8] sm:$0xff]
        %v805 = vld [vmem:[%s193 + $0xd0] sm:$0xff]
        %v806 = vld [vmem:[%s193 + $0xd8] sm:$0xff]
        %v807 = vld [vmem:[%s193 + $0xe0] sm:$0xff]
        %v808 = vld [vmem:[%s193 + $0xe8] sm:$0xff]
        %v809 = vld [vmem:[%s193 + $0xf0] sm:$0xff]
        %v810 = vld [vmem:[%s193 + $0xf8] sm:$0xff]
        %s811 = smul.u32 %s280, 256
        %s812 = sadd.s32 %s281, %s811
        %s813 = scalar_lea.vmem [#allocation2], %s812
        %814 = vst [vmem:[%s813] sm:$0xff] %v779
        %815 = vst [vmem:[%s813 + $0x8] sm:$0xff] %v780
        %816 = vst [vmem:[%s813 + $0x10] sm:$0xff] %v781
        %817 = vst [vmem:[%s813 + $0x18] sm:$0xff] %v782
        %818 = vst [vmem:[%s813 + $0x20] sm:$0xff] %v783
        %819 = vst [vmem:[%s813 + $0x28] sm:$0xff] %v784
        %820 = vst [vmem:[%s813 + $0x30] sm:$0xff] %v785
        %821 = vst [vmem:[%s813 + $0x38] sm:$0xff] %v786
        %822 = vst [vmem:[%s813 + $0x40] sm:$0xff] %v787
        %823 = vst [vmem:[%s813 + $0x48] sm:$0xff] %v788
        %824 = vst [vmem:[%s813 + $0x50] sm:$0xff] %v789
        %825 = vst [vmem:[%s813 + $0x58] sm:$0xff] %v790
        %826 = vst [vmem:[%s813 + $0x60] sm:$0xff] %v791
        %827 = vst [vmem:[%s813 + $0x68] sm:$0xff] %v792
        %828 = vst [vmem:[%s813 + $0x70] sm:$0xff] %v793
        %829 = vst [vmem:[%s813 + $0x78] sm:$0xff] %v794
        %830 = vst [vmem:[%s813 + $0x80] sm:$0xff] %v795
        %831 = vst [vmem:[%s813 + $0x88] sm:$0xff] %v796
        %832 = vst [vmem:[%s813 + $0x90] sm:$0xff] %v797
        %833 = vst [vmem:[%s813 + $0x98] sm:$0xff] %v798
        %834 = vst [vmem:[%s813 + $0xa0] sm:$0xff] %v799
        %835 = vst [vmem:[%s813 + $0xa8] sm:$0xff] %v800
        %836 = vst [vmem:[%s813 + $0xb0] sm:$0xff] %v801
        %837 = vst [vmem:[%s813 + $0xb8] sm:$0xff] %v802
        %838 = vst [vmem:[%s813 + $0xc0] sm:$0xff] %v803
        %839 = vst [vmem:[%s813 + $0xc8] sm:$0xff] %v804
        %840 = vst [vmem:[%s813 + $0xd0] sm:$0xff] %v805
        %841 = vst [vmem:[%s813 + $0xd8] sm:$0xff] %v806
        %842 = vst [vmem:[%s813 + $0xe0] sm:$0xff] %v807
        %843 = vst [vmem:[%s813 + $0xe8] sm:$0xff] %v808
        %844 = vst [vmem:[%s813 + $0xf0] sm:$0xff] %v809
        %845 = vst [vmem:[%s813 + $0xf8] sm:$0xff] %v810
      $region40: #{_lightgcn_stack_impl.1} parent=27 // pred_fallthru
        _
      %s846 = smul.u32 32, %s19
      %p847 = scmp.lt.s32.totalorder %s18, 2
      %s848 = scalar_select %p847, %s18, 2
      %p849 = scmp.lt.s32.totalorder %s846, 31
      %s850 = scalar_select %p849, %s846, 31
      %s851 = smul.addr %s848, 32
      %s852 = sadd.s32 %s850, %s851
      %s853 = smul.addr %s852, 8
      %s854 = scalar_lea.vmem %s2, %s853
      // Predicated region
      $region41: #{_lightgcn_stack_impl.1} parent=27 // pred_check
        %p855 = pneg %p101
      $region42: #{_lightgcn_stack_impl.1} parent=27 // pred_check_branch
        %857 = sbr.rel (%p855) target = $region44
      $region43: #{_lightgcn_stack_impl.1} parent=27 // pred_region
        %s858 = smul.u32 32, %s19
      $region44: #{_lightgcn_stack_impl.1} parent=27 // pred_fallthru
        _
    $region28: #{_lightgcn_stack_impl.1} parent=5 // pred_fallthru
      _
    %p859 = scmp.le.s32.totalorder 2, %s8
    // Predicated region
    $region45: #{_lightgcn_stack_impl.1} parent=5 // pred_check
      %p860 = pneg %p859
    $region46: #{_lightgcn_stack_impl.1} parent=5 // pred_check_branch
      %862 = sbr.rel (%p860) target = $region48
    $region47: #{_lightgcn_stack_impl.1} parent=5 // pred_region
      %s863 = ssub.s32 %s8, 2
      // Predicated region
      $region49: #{_lightgcn_stack_impl.1} parent=47 // pred_check
        %p864 = pneg %p107
      $region50: #{_lightgcn_stack_impl.1} parent=47 // pred_check_branch
        %866 = sbr.rel (%p864) target = $region52
      $region51: #{_lightgcn_stack_impl.1} parent=47 // pred_region
        %s867 = smul.u32 32, %s22
        %p868 = scmp.lt.s32.totalorder %s21, 2
        %s869 = scalar_select %p868, %s21, 2
        %p870 = scmp.lt.s32.totalorder %s867, 31
        %s871 = scalar_select %p870, %s867, 31
        %s872 = smul.addr %s869, 32
        %s873 = sadd.s32 %s871, %s872
        %s874 = smul.addr %s873, 8
        %s875 = scalar_lea.vmem %s2, %s874
      $region52: #{_lightgcn_stack_impl.1} parent=47 // pred_fallthru
        _
    $region48: #{_lightgcn_stack_impl.1} parent=5 // pred_fallthru
      _
  $region6: #{_lightgcn_stack_impl.1} parent=0 // loop_footer
    %s12 = sadd.s32 1, %s8
  $region7: #{_lightgcn_stack_impl.1} parent=0 // loop_footer_branch
    %7 = sbr.rel target = $region3
  $region8: #{_lightgcn_stack_impl.1} parent=0 // loop_exit
    _

// kernel: _lightgcn_stack_impl.1
$region0: #{_lightgcn_stack_impl.1}
  #allocation0 [shape = 'u32[]', space=smem, size = 0x4, offset = 0x4, fixed_abs, tag = 'smem constant byte address 0x4 - core index']
  #allocation1 [shape = 'u32[144,128]{1,0:T(1,128)}', space=vmem, size = 0x12000, scoped, tag = 'internal scratch']
  #allocation2 [shape = 'f32[2,256,128]{2,1,0:T(8,128)}', space=vmem, size = 0x40000, scoped, tag = 'scratch operand']
  %s0 = inlined_call_operand.vmem [shape: f32[256,256], index: 0, kind: input, shape index: {}]
  %s1 = inlined_call_operand.vmem [shape: f32[256,128], index: 1, kind: input, shape index: {}]
  %s2 = inlined_call_operand.vmem [shape: f32[3,256,128], index: 2, kind: output, shape index: {}]
  %s3 = sld [smem:[#allocation0]]
  $region53: #{_lightgcn_stack_impl.1} parent=0
    _
  %s5 = ssub.s32 1, %s3
  %s6 = scalar_select 0, %s5, %s3
  loop: start=0, step=1, limit=5
  $region2: #{_lightgcn_stack_impl.1} parent=0 // loop_pre_header
    _
  $region3: #{_lightgcn_stack_impl.1} parent=0 // loop_header
    %s8 = sphi 0, %s12
    %p9 = scmp.ge.s32.totalorder %s8, 5
    %s15 = sphi 0, %s34
    %s16 = sphi 0, %s30
    %s17 = sphi 0, %s26
    %s18 = sphi 0, %s15
    %s19 = sphi 0, %s16
    %s20 = sphi 0, %s17
    %s21 = sphi 0, %s18
    %s22 = sphi 0, %s19
    %s23 = sphi 0, %s20
    %s39 = sphi 0, %s41
    %s42 = sphi 0, %s39
    %s43 = sphi 0, %s42
    %s59 = sphi 0, %s43
    %s63 = sphi 0, %s63
    %s65 = sphi 0, %s63
    %s66 = sphi 0, %s65
    %s80 = sphi 0, %s66
    %s88 = sphi 0, %s90
    %s91 = sphi 0, %s88
    %s92 = sphi 0, %s91
    %s108 = sphi 0, %s92
  $region4: #{_lightgcn_stack_impl.1} parent=0 // loop_header_branch
    %11 = sbr.rel (%p9) target = $region8
  $region5: #{_lightgcn_stack_impl.1} parent=0 // loop_body
    %s13 = ssub.s32 %s8, 1
    %s14 = ssub.s32 %s8, 2
    %s24 = sadd.s32 1, %s17
    %p25 = scmp.ge.s32.totalorder %s24, 1
    %s26 = scalar_select %p25, 0, %s24
    %s27 = sadd.s32 1, %s16
    %s28 = scalar_select %p25, %s27, %s16
    %p29 = scmp.ge.s32.totalorder %s28, 1
    %s30 = scalar_select %p29, 0, %s28
    %s31 = sadd.s32 1, %s15
    %s32 = scalar_select %p29, %s31, %s15
    %p33 = scmp.ge.s32.totalorder %s32, 3
    %s34 = scalar_select %p33, 0, %s32
    %s35 = ssub.s32 %s16, %s30
    %s36 = ssub.s32 %s17, %s26
    %s37 = sor.u32 %s35, %s36
    %p38 = scmp.eq.s32.totalorder %s37, 0
    %s40 = sadd.s32 %s39, 1
    %s41 = scalar_select %p38, %s39, %s40
    %p44 = pneg %p38
    %p45 = scmp.eq.s32.totalorder %s8, 2
    %p46 = por %p44, %p45
    %p47 = scmp.ne.s32.totalorder %s39, %s42
    %p48 = scmp.eq.s32.totalorder %s8, 0
    %p49 = por %p47, %p48
    %p50 = scmp.ne.s32.totalorder %s39, %s42
    %p51 = scmp.eq.s32.totalorder %s13, 2
    %p52 = por %p50, %p51
    %p53 = scmp.ne.s32.totalorder %s42, %s43
    %p54 = scmp.eq.s32.totalorder %s13, 0
    %p55 = por %p53, %p54
    %p56 = scmp.ne.s32.totalorder %s42, %s43
    %p57 = scmp.eq.s32.totalorder %s14, 2
    %p58 = por %p56, %p57
    %p60 = scmp.ne.s32.totalorder %s43, %s59
    %p61 = scmp.eq.s32.totalorder %s14, 0
    %p62 = por %p60, %p61
    %s64 = sadd.s32 %s63, 1
    %p67 = scmp.eq.s32.totalorder %s8, 2
    %p68 = scmp.ne.s32.totalorder %s63, %s65
    %p69 = scmp.eq.s32.totalorder %s8, 0
    %p70 = por %p68, %p69
    %p71 = scmp.ne.s32.totalorder %s63, %s65
    %p72 = scmp.eq.s32.totalorder %s13, 2
    %p73 = por %p71, %p72
    %p74 = scmp.ne.s32.totalorder %s65, %s66
    %p75 = scmp.eq.s32.totalorder %s13, 0
    %p76 = por %p74, %p75
    %p77 = scmp.ne.s32.totalorder %s65, %s66
    %p78 = scmp.eq.s32.totalorder %s14, 2
    %p79 = por %p77, %p78
    %p81 = scmp.ne.s32.totalorder %s66, %s80
    %p82 = scmp.eq.s32.totalorder %s14, 0
    %p83 = por %p81, %p82
    %s84 = ssub.s32 %s15, %s34
    %s85 = ssub.s32 %s16, %s30
    %s86 = sor.u32 %s84, %s85
    %p87 = scmp.eq.s32.totalorder %s86, 0
    %s89 = sadd.s32 %s88, 1
    %s90 = scalar_select %p87, %s88, %s89
    %p93 = pneg %p87
    %p94 = scmp.eq.s32.totalorder %s8, 2
    %p95 = por %p93, %p94
    %p96 = scmp.ne.s32.totalorder %s88, %s91
    %p97 = scmp.eq.s32.totalorder %s8, 0
    %p98 = por %p96, %p97
    %p99 = scmp.ne.s32.totalorder %s88, %s91
    %p100 = scmp.eq.s32.totalorder %s13, 2
    %p101 = por %p99, %p100
    %p102 = scmp.ne.s32.totalorder %s91, %s92
    %p103 = scmp.eq.s32.totalorder %s13, 0
    %p104 = por %p102, %p103
    %p105 = scmp.ne.s32.totalorder %s91, %s92
    %p106 = scmp.eq.s32.totalorder %s14, 2
    %p107 = por %p105, %p106
    %p109 = scmp.ne.s32.totalorder %s92, %s108
    %p110 = scmp.eq.s32.totalorder %s14, 0
    %p111 = por %p109, %p110
    %p112 = scmp.le.s32.totalorder 1, %s8
    %p113 = scmp.lt.s32.totalorder %s8, 4
    %p114 = pnand %p112, %p113
    %p115 = pneg %p114
    // Predicated region
    $region9: #{_lightgcn_stack_impl.1} parent=5 // pred_check
      _
    $region10: #{_lightgcn_stack_impl.1} parent=5 // pred_check_branch
      %117 = sbr.rel (%p114) target = $region12
    $region11: #{_lightgcn_stack_impl.1} parent=5 // pred_region
      %s118 = ssub.s32 %s8, 1
      // Predicated region
      $region13: #{_lightgcn_stack_impl.1} parent=11 // pred_check
        %p119 = pneg %p55
      $region14: #{_lightgcn_stack_impl.1} parent=11 // pred_check_branch
        %121 = sbr.rel (%p119) target = $region16
      $region15: #{_lightgcn_stack_impl.1} parent=11 // pred_region
        %s122 = smul.u32 32, %s19
        %s123 = smul.u32 2, %s20
        %p124 = scmp.lt.s32.totalorder %s122, 31
        %s125 = scalar_select %p124, %s122, 31
        %p126 = scmp.lt.s32.totalorder %s123, 1
        %s127 = scalar_select %p126, %s123, 1
        %s128 = smul.addr %s125, 2
        %s129 = sadd.s32 %s127, %s128
        %s130 = smul.addr %s129, 8
        %s131 = scalar_lea.vmem %s0, %s130
        %s132 = smul.u32 32, %s19
        %s133 = smul.u32 2, %s20
      $region16: #{_lightgcn_stack_impl.1} parent=11 // pred_fallthru
        _
      // Predicated region
      $region17: #{_lightgcn_stack_impl.1} parent=11 // pred_check
        %p134 = pneg %p76
      $region18: #{_lightgcn_stack_impl.1} parent=11 // pred_check_branch
        %136 = sbr.rel (%p134) target = $region20
      $region19: #{_lightgcn_stack_impl.1} parent=11 // pred_region
        _
      $region20: #{_lightgcn_stack_impl.1} parent=11 // pred_fallthru
        _
    $region12: #{_lightgcn_stack_impl.1} parent=5 // pred_fallthru
      _
    %p137 = scmp.lt.s32.totalorder %s8, 3
    // Predicated region
    $region21: #{_lightgcn_stack_impl.1} parent=5 // pred_check
      %p138 = pneg %p137
    $region22: #{_lightgcn_stack_impl.1} parent=5 // pred_check_branch
      %140 = sbr.rel (%p138) target = $region24
    $region23: #{_lightgcn_stack_impl.1} parent=5 // pred_region
      _
    $region24: #{_lightgcn_stack_impl.1} parent=5 // pred_fallthru
      _
    %p141 = scmp.le.s32.totalorder 1, %s8
    %p142 = scmp.lt.s32.totalorder %s8, 4
    %p143 = pnand %p141, %p142
    %p144 = pneg %p143
    // Predicated region
    $region25: #{_lightgcn_stack_impl.1} parent=5 // pred_check
      _
    $region26: #{_lightgcn_stack_impl.1} parent=5 // pred_check_branch
      %146 = sbr.rel (%p143) target = $region28
    $region27: #{_lightgcn_stack_impl.1} parent=5 // pred_region
      %s147 = ssub.s32 %s8, 1
      %s148 = smul.u32 32, %s19
      %s149 = smul.u32 2, %s20
      %p150 = scmp.lt.s32.totalorder %s148, 31
      %s151 = scalar_select %p150, %s148, 31
      %p152 = scmp.lt.s32.totalorder %s149, 1
      %s153 = scalar_select %p152, %s149, 1
      %s154 = smul.addr %s151, 2
      %s155 = sadd.s32 %s153, %s154
      %s156 = smul.addr %s155, 8
      %s157 = scalar_lea.vmem %s0, %s156
      %p158 = pneg %p55
      %p159 = pneg %p52
      %p160 = pneg %p76
      %p161 = pneg %p73
      %p162 = pneg %p104
      %p163 = pneg %p101
      %s164 = smul.u32 32, %s19
      %p165 = scmp.lt.s32.totalorder %s18, 2
      %s166 = scalar_select %p165, %s18, 2
      %p167 = scmp.lt.s32.totalorder %s164, 31
      %s168 = scalar_select %p167, %s164, 31
      %s169 = smul.addr %s166, 32
      %s170 = sadd.s32 %s168, %s169
      %s171 = smul.addr %s170, 8
      %s172 = scalar_lea.vmem %s2, %s171
      %s173 = smul.u32 32, %s19
      %s174 = smul.u32 2, %s20
      %p175 = scmp.lt.s32.totalorder %s173, 31
      %s176 = scalar_select %p175, %s173, 31
      %p177 = scmp.lt.s32.totalorder %s174, 1
      %s178 = scalar_select %p177, %s174, 1
      %s179 = smul.addr %s176, 2
      %s180 = sadd.s32 %s178, %s179
      %s181 = smul.addr %s180, 8
      %s182 = scalar_lea.vmem %s0, %s181
      %s183 = smul.u32 32, %s19
      %s184 = smul.u32 2, %s20
      %s185 = smul.u32 32, %s19
      %p186 = scmp.lt.s32.totalorder %s18, 2
      %s187 = scalar_select %p186, %s18, 2
      %p188 = scmp.lt.s32.totalorder %s185, 31
      %s189 = scalar_select %p188, %s185, 31
      %s190 = smul.addr %s187, 32
      %s191 = sadd.s32 %s189, %s190
      %s192 = smul.addr %s191, 8
      %s193 = scalar_lea.vmem %s2, %s192
      %s194 = smul.u32 32, %s19
      %p195 = scmp.eq.s32.totalorder %s18, 0
      %p196 = scmp.eq.s32.totalorder %s19, 0
      %p197 = pnand %p195, %p196
      %p198 = pneg %p197
      %p199 = scmp.eq.s32.totalorder %s20, 0
      %p200 = pnand %p198, %p199
      %p201 = pneg %p200
      // Predicated region
      $region29: #{_lightgcn_stack_impl.1} parent=27 // pred_check
        _
      $region30: #{_lightgcn_stack_impl.1} parent=27 // pred_check_branch
        %203 = sbr.rel (%p200) target = $region32
      $region31: #{_lightgcn_stack_impl.1} parent=27 // pred_region
        %v204 = vld [vmem:[%s1] sm:$0xff]
        %v205 = vld [vmem:[%s1 + $0x8] sm:$0xff]
        %v206 = vld [vmem:[%s1 + $0x10] sm:$0xff]
        %v207 = vld [vmem:[%s1 + $0x18] sm:$0xff]
        %v208 = vld [vmem:[%s1 + $0x20] sm:$0xff]
        %v209 = vld [vmem:[%s1 + $0x28] sm:$0xff]
        %v210 = vld [vmem:[%s1 + $0x30] sm:$0xff]
        %v211 = vld [vmem:[%s1 + $0x38] sm:$0xff]
        %v212 = vld [vmem:[%s1 + $0x40] sm:$0xff]
        %v213 = vld [vmem:[%s1 + $0x48] sm:$0xff]
        %v214 = vld [vmem:[%s1 + $0x50] sm:$0xff]
        %v215 = vld [vmem:[%s1 + $0x58] sm:$0xff]
        %v216 = vld [vmem:[%s1 + $0x60] sm:$0xff]
        %v217 = vld [vmem:[%s1 + $0x68] sm:$0xff]
        %v218 = vld [vmem:[%s1 + $0x70] sm:$0xff]
        %v219 = vld [vmem:[%s1 + $0x78] sm:$0xff]
        %v220 = vld [vmem:[%s1 + $0x80] sm:$0xff]
        %v221 = vld [vmem:[%s1 + $0x88] sm:$0xff]
        %v222 = vld [vmem:[%s1 + $0x90] sm:$0xff]
        %v223 = vld [vmem:[%s1 + $0x98] sm:$0xff]
        %v224 = vld [vmem:[%s1 + $0xa0] sm:$0xff]
        %v225 = vld [vmem:[%s1 + $0xa8] sm:$0xff]
        %v226 = vld [vmem:[%s1 + $0xb0] sm:$0xff]
        %v227 = vld [vmem:[%s1 + $0xb8] sm:$0xff]
        %v228 = vld [vmem:[%s1 + $0xc0] sm:$0xff]
        %v229 = vld [vmem:[%s1 + $0xc8] sm:$0xff]
        %v230 = vld [vmem:[%s1 + $0xd0] sm:$0xff]
        %v231 = vld [vmem:[%s1 + $0xd8] sm:$0xff]
        %v232 = vld [vmem:[%s1 + $0xe0] sm:$0xff]
        %v233 = vld [vmem:[%s1 + $0xe8] sm:$0xff]
        %v234 = vld [vmem:[%s1 + $0xf0] sm:$0xff]
        %v235 = vld [vmem:[%s1 + $0xf8] sm:$0xff]
        %236 = vst [vmem:[#allocation2] sm:$0xff] %v204
        %237 = vst [vmem:[#allocation2 + $0x8] sm:$0xff] %v205
        %238 = vst [vmem:[#allocation2 + $0x10] sm:$0xff] %v206
        %239 = vst [vmem:[#allocation2 + $0x18] sm:$0xff] %v207
        %240 = vst [vmem:[#allocation2 + $0x20] sm:$0xff] %v208
        %241 = vst [vmem:[#allocation2 + $0x28] sm:$0xff] %v209
        %242 = vst [vmem:[#allocation2 + $0x30] sm:$0xff] %v210
        %243 = vst [vmem:[#allocation2 + $0x38] sm:$0xff] %v211
        %244 = vst [vmem:[#allocation2 + $0x40] sm:$0xff] %v212
        %245 = vst [vmem:[#allocation2 + $0x48] sm:$0xff] %v213
        %246 = vst [vmem:[#allocation2 + $0x50] sm:$0xff] %v214
        %247 = vst [vmem:[#allocation2 + $0x58] sm:$0xff] %v215
        %248 = vst [vmem:[#allocation2 + $0x60] sm:$0xff] %v216
        %249 = vst [vmem:[#allocation2 + $0x68] sm:$0xff] %v217
        %250 = vst [vmem:[#allocation2 + $0x70] sm:$0xff] %v218
        %251 = vst [vmem:[#allocation2 + $0x78] sm:$0xff] %v219
        %252 = vst [vmem:[#allocation2 + $0x80] sm:$0xff] %v220
        %253 = vst [vmem:[#allocation2 + $0x88] sm:$0xff] %v221
        %254 = vst [vmem:[#allocation2 + $0x90] sm:$0xff] %v222
        %255 = vst [vmem:[#allocation2 + $0x98] sm:$0xff] %v223
        %256 = vst [vmem:[#allocation2 + $0xa0] sm:$0xff] %v224
        %257 = vst [vmem:[#allocation2 + $0xa8] sm:$0xff] %v225
        %258 = vst [vmem:[#allocation2 + $0xb0] sm:$0xff] %v226
        %259 = vst [vmem:[#allocation2 + $0xb8] sm:$0xff] %v227
        %260 = vst [vmem:[#allocation2 + $0xc0] sm:$0xff] %v228
        %261 = vst [vmem:[#allocation2 + $0xc8] sm:$0xff] %v229
        %262 = vst [vmem:[#allocation2 + $0xd0] sm:$0xff] %v230
        %263 = vst [vmem:[#allocation2 + $0xd8] sm:$0xff] %v231
        %264 = vst [vmem:[#allocation2 + $0xe0] sm:$0xff] %v232
        %265 = vst [vmem:[#allocation2 + $0xe8] sm:$0xff] %v233
        %266 = vst [vmem:[#allocation2 + $0xf0] sm:$0xff] %v234
        %267 = vst [vmem:[#allocation2 + $0xf8] sm:$0xff] %v235
      $region32: #{_lightgcn_stack_impl.1} parent=27 // pred_fallthru
        _
      %p268 = scmp.lt.s32.totalorder %s18, 0
      %s269 = ssub.s32 0, %s18
      %s270 = scalar_select %p268, %s269, %s18
      %s271 = sand.u32 %s270, 1
      %s272 = ssub.s32 0, %s271
      %s273 = scalar_select %p268, %s272, %s271
      %p274 = scmp.ne.s32.totalorder %s273, 0
      %p275 = scmp.lt.s32.totalorder %s273, 0
      %p276 = pnand %p275, %p274
      %p277 = pneg %p276
      %s278 = sadd.s32 %s273, 2
      %s279 = scalar_select %p277, %s278, %s273
      %s280 = ssub.s32 1, %s279
      %s281 = smul.u32 %s19, 256
      %s282 = smul.u32 %s20, 256
      // Predicated region
      $region33: #{_lightgcn_stack_impl.1} parent=27 // pred_check
        %p283 = pneg %p199
      $region34: #{_lightgcn_stack_impl.1} parent=27 // pred_check_branch
        %285 = sbr.rel (%p283) target = $region36
      $region35: #{_lightgcn_stack_impl.1} parent=27 // pred_region
        %s286 = smul.u32 %s279, 256
        %s287 = sadd.s32 %s281, %s286
        %s288 = scalar_lea.vmem [#allocation2], %s287
        %v289 = vld [vmem:[%s288] sm:$0xff]
        %v290 = vld [vmem:[%s288 + $0x8] sm:$0xff]
        %v291 = vld [vmem:[%s288 + $0x10] sm:$0xff]
        %v292 = vld [vmem:[%s288 + $0x18] sm:$0xff]
        %v293 = vld [vmem:[%s288 + $0x20] sm:$0xff]
        %v294 = vld [vmem:[%s288 + $0x28] sm:$0xff]
        %v295 = vld [vmem:[%s288 + $0x30] sm:$0xff]
        %v296 = vld [vmem:[%s288 + $0x38] sm:$0xff]
        %v297 = vld [vmem:[%s288 + $0x40] sm:$0xff]
        %v298 = vld [vmem:[%s288 + $0x48] sm:$0xff]
        %v299 = vld [vmem:[%s288 + $0x50] sm:$0xff]
        %v300 = vld [vmem:[%s288 + $0x58] sm:$0xff]
        %v301 = vld [vmem:[%s288 + $0x60] sm:$0xff]
        %v302 = vld [vmem:[%s288 + $0x68] sm:$0xff]
        %v303 = vld [vmem:[%s288 + $0x70] sm:$0xff]
        %v304 = vld [vmem:[%s288 + $0x78] sm:$0xff]
        %v305 = vld [vmem:[%s288 + $0x80] sm:$0xff]
        %v306 = vld [vmem:[%s288 + $0x88] sm:$0xff]
        %v307 = vld [vmem:[%s288 + $0x90] sm:$0xff]
        %v308 = vld [vmem:[%s288 + $0x98] sm:$0xff]
        %v309 = vld [vmem:[%s288 + $0xa0] sm:$0xff]
        %v310 = vld [vmem:[%s288 + $0xa8] sm:$0xff]
        %v311 = vld [vmem:[%s288 + $0xb0] sm:$0xff]
        %v312 = vld [vmem:[%s288 + $0xb8] sm:$0xff]
        %v313 = vld [vmem:[%s288 + $0xc0] sm:$0xff]
        %v314 = vld [vmem:[%s288 + $0xc8] sm:$0xff]
        %v315 = vld [vmem:[%s288 + $0xd0] sm:$0xff]
        %v316 = vld [vmem:[%s288 + $0xd8] sm:$0xff]
        %v317 = vld [vmem:[%s288 + $0xe0] sm:$0xff]
        %v318 = vld [vmem:[%s288 + $0xe8] sm:$0xff]
        %v319 = vld [vmem:[%s288 + $0xf0] sm:$0xff]
        %v320 = vld [vmem:[%s288 + $0xf8] sm:$0xff]
        %321 = vst [vmem:[%s193] sm:$0xff] %v289
        %322 = vst [vmem:[%s193 + $0x8] sm:$0xff] %v290
        %323 = vst [vmem:[%s193 + $0x10] sm:$0xff] %v291
        %324 = vst [vmem:[%s193 + $0x18] sm:$0xff] %v292
        %325 = vst [vmem:[%s193 + $0x20] sm:$0xff] %v293
        %326 = vst [vmem:[%s193 + $0x28] sm:$0xff] %v294
        %327 = vst [vmem:[%s193 + $0x30] sm:$0xff] %v295
        %328 = vst [vmem:[%s193 + $0x38] sm:$0xff] %v296
        %329 = vst [vmem:[%s193 + $0x40] sm:$0xff] %v297
        %330 = vst [vmem:[%s193 + $0x48] sm:$0xff] %v298
        %331 = vst [vmem:[%s193 + $0x50] sm:$0xff] %v299
        %332 = vst [vmem:[%s193 + $0x58] sm:$0xff] %v300
        %333 = vst [vmem:[%s193 + $0x60] sm:$0xff] %v301
        %334 = vst [vmem:[%s193 + $0x68] sm:$0xff] %v302
        %335 = vst [vmem:[%s193 + $0x70] sm:$0xff] %v303
        %336 = vst [vmem:[%s193 + $0x78] sm:$0xff] %v304
        %337 = vst [vmem:[%s193 + $0x80] sm:$0xff] %v305
        %338 = vst [vmem:[%s193 + $0x88] sm:$0xff] %v306
        %339 = vst [vmem:[%s193 + $0x90] sm:$0xff] %v307
        %340 = vst [vmem:[%s193 + $0x98] sm:$0xff] %v308
        %341 = vst [vmem:[%s193 + $0xa0] sm:$0xff] %v309
        %342 = vst [vmem:[%s193 + $0xa8] sm:$0xff] %v310
        %343 = vst [vmem:[%s193 + $0xb0] sm:$0xff] %v311
        %344 = vst [vmem:[%s193 + $0xb8] sm:$0xff] %v312
        %345 = vst [vmem:[%s193 + $0xc0] sm:$0xff] %v313
        %346 = vst [vmem:[%s193 + $0xc8] sm:$0xff] %v314
        %347 = vst [vmem:[%s193 + $0xd0] sm:$0xff] %v315
        %348 = vst [vmem:[%s193 + $0xd8] sm:$0xff] %v316
        %349 = vst [vmem:[%s193 + $0xe0] sm:$0xff] %v317
        %350 = vst [vmem:[%s193 + $0xe8] sm:$0xff] %v318
        %351 = vst [vmem:[%s193 + $0xf0] sm:$0xff] %v319
        %352 = vst [vmem:[%s193 + $0xf8] sm:$0xff] %v320
      $region36: #{_lightgcn_stack_impl.1} parent=27 // pred_fallthru
        _
      %v353 = vld [vmem:[%s182] sm:$0xff]
      %v354 = vld [vmem:[%s182 + $0x8] sm:$0xff]
      %v355 = vld [vmem:[%s182 + $0x10] sm:$0xff]
      %v356 = vld [vmem:[%s182 + $0x18] sm:$0xff]
      %v357 = vld [vmem:[%s182 + $0x20] sm:$0xff]
      %v358 = vld [vmem:[%s182 + $0x28] sm:$0xff]
      %v359 = vld [vmem:[%s182 + $0x30] sm:$0xff]
      %v360 = vld [vmem:[%s182 + $0x38] sm:$0xff]
      %v361 = vld [vmem:[%s182 + $0x40] sm:$0xff]
      %v362 = vld [vmem:[%s182 + $0x48] sm:$0xff]
      %v363 = vld [vmem:[%s182 + $0x50] sm:$0xff]
      %v364 = vld [vmem:[%s182 + $0x58] sm:$0xff]
      %v365 = vld [vmem:[%s182 + $0x60] sm:$0xff]
      %v366 = vld [vmem:[%s182 + $0x68] sm:$0xff]
      %v367 = vld [vmem:[%s182 + $0x70] sm:$0xff]
      %v368 = vld [vmem:[%s182 + $0x78] sm:$0xff]
      %v369 = vld [vmem:[%s182 + $0x80] sm:$0xff]
      %v370 = vld [vmem:[%s182 + $0x88] sm:$0xff]
      %v371 = vld [vmem:[%s182 + $0x90] sm:$0xff]
      %v372 = vld [vmem:[%s182 + $0x98] sm:$0xff]
      %v373 = vld [vmem:[%s182 + $0xa0] sm:$0xff]
      %v374 = vld [vmem:[%s182 + $0xa8] sm:$0xff]
      %v375 = vld [vmem:[%s182 + $0xb0] sm:$0xff]
      %v376 = vld [vmem:[%s182 + $0xb8] sm:$0xff]
      %v377 = vld [vmem:[%s182 + $0xc0] sm:$0xff]
      %v378 = vld [vmem:[%s182 + $0xc8] sm:$0xff]
      %v379 = vld [vmem:[%s182 + $0xd0] sm:$0xff]
      %v380 = vld [vmem:[%s182 + $0xd8] sm:$0xff]
      %v381 = vld [vmem:[%s182 + $0xe0] sm:$0xff]
      %v382 = vld [vmem:[%s182 + $0xe8] sm:$0xff]
      %v383 = vld [vmem:[%s182 + $0xf0] sm:$0xff]
      %v384 = vld [vmem:[%s182 + $0xf8] sm:$0xff]
      %v385 = vld [vmem:[%s182 + $0x100] sm:$0xff]
      %v386 = vld [vmem:[%s182 + $0x108] sm:$0xff]
      %v387 = vld [vmem:[%s182 + $0x110] sm:$0xff]
      %v388 = vld [vmem:[%s182 + $0x118] sm:$0xff]
      %v389 = vld [vmem:[%s182 + $0x120] sm:$0xff]
      %v390 = vld [vmem:[%s182 + $0x128] sm:$0xff]
      %v391 = vld [vmem:[%s182 + $0x130] sm:$0xff]
      %v392 = vld [vmem:[%s182 + $0x138] sm:$0xff]
      %v393 = vld [vmem:[%s182 + $0x140] sm:$0xff]
      %v394 = vld [vmem:[%s182 + $0x148] sm:$0xff]
      %v395 = vld [vmem:[%s182 + $0x150] sm:$0xff]
      %v396 = vld [vmem:[%s182 + $0x158] sm:$0xff]
      %v397 = vld [vmem:[%s182 + $0x160] sm:$0xff]
      %v398 = vld [vmem:[%s182 + $0x168] sm:$0xff]
      %v399 = vld [vmem:[%s182 + $0x170] sm:$0xff]
      %v400 = vld [vmem:[%s182 + $0x178] sm:$0xff]
      %v401 = vld [vmem:[%s182 + $0x180] sm:$0xff]
      %v402 = vld [vmem:[%s182 + $0x188] sm:$0xff]
      %v403 = vld [vmem:[%s182 + $0x190] sm:$0xff]
      %v404 = vld [vmem:[%s182 + $0x198] sm:$0xff]
      %v405 = vld [vmem:[%s182 + $0x1a0] sm:$0xff]
      %v406 = vld [vmem:[%s182 + $0x1a8] sm:$0xff]
      %v407 = vld [vmem:[%s182 + $0x1b0] sm:$0xff]
      %v408 = vld [vmem:[%s182 + $0x1b8] sm:$0xff]
      %v409 = vld [vmem:[%s182 + $0x1c0] sm:$0xff]
      %v410 = vld [vmem:[%s182 + $0x1c8] sm:$0xff]
      %v411 = vld [vmem:[%s182 + $0x1d0] sm:$0xff]
      %v412 = vld [vmem:[%s182 + $0x1d8] sm:$0xff]
      %v413 = vld [vmem:[%s182 + $0x1e0] sm:$0xff]
      %v414 = vld [vmem:[%s182 + $0x1e8] sm:$0xff]
      %v415 = vld [vmem:[%s182 + $0x1f0] sm:$0xff]
      %v416 = vld [vmem:[%s182 + $0x1f8] sm:$0xff]
      %s417 = smul.u32 %s279, 256
      %s418 = sadd.s32 %s282, %s417
      %s419 = scalar_lea.vmem [#allocation2], %s418
      %v420 = vld [vmem:[%s419] sm:$0xff]
      %v421 = vld [vmem:[%s419 + $0x8] sm:$0xff]
      %v422 = vld [vmem:[%s419 + $0x10] sm:$0xff]
      %v423 = vld [vmem:[%s419 + $0x18] sm:$0xff]
      %v424 = vld [vmem:[%s419 + $0x20] sm:$0xff]
      %v425 = vld [vmem:[%s419 + $0x28] sm:$0xff]
      %v426 = vld [vmem:[%s419 + $0x30] sm:$0xff]
      %v427 = vld [vmem:[%s419 + $0x38] sm:$0xff]
      %v428 = vld [vmem:[%s419 + $0x40] sm:$0xff]
      %v429 = vld [vmem:[%s419 + $0x48] sm:$0xff]
      %v430 = vld [vmem:[%s419 + $0x50] sm:$0xff]
      %v431 = vld [vmem:[%s419 + $0x58] sm:$0xff]
      %v432 = vld [vmem:[%s419 + $0x60] sm:$0xff]
      %v433 = vld [vmem:[%s419 + $0x68] sm:$0xff]
      %v434 = vld [vmem:[%s419 + $0x70] sm:$0xff]
      %v435 = vld [vmem:[%s419 + $0x78] sm:$0xff]
      %v436 = vld [vmem:[%s419 + $0x80] sm:$0xff]
      %v437 = vld [vmem:[%s419 + $0x88] sm:$0xff]
      %v438 = vld [vmem:[%s419 + $0x90] sm:$0xff]
      %v439 = vld [vmem:[%s419 + $0x98] sm:$0xff]
      %v440 = vld [vmem:[%s419 + $0xa0] sm:$0xff]
      %v441 = vld [vmem:[%s419 + $0xa8] sm:$0xff]
      %v442 = vld [vmem:[%s419 + $0xb0] sm:$0xff]
      %v443 = vld [vmem:[%s419 + $0xb8] sm:$0xff]
      %v444 = vld [vmem:[%s419 + $0xc0] sm:$0xff]
      %v445 = vld [vmem:[%s419 + $0xc8] sm:$0xff]
      %v446 = vld [vmem:[%s419 + $0xd0] sm:$0xff]
      %v447 = vld [vmem:[%s419 + $0xd8] sm:$0xff]
      %v448 = vld [vmem:[%s419 + $0xe0] sm:$0xff]
      %v449 = vld [vmem:[%s419 + $0xe8] sm:$0xff]
      %v450 = vld [vmem:[%s419 + $0xf0] sm:$0xff]
      %v451 = vld [vmem:[%s419 + $0xf8] sm:$0xff]
      %v452 = vld [vmem:[%s193] sm:$0xff]
      %v453 = vld [vmem:[%s193 + $0x8] sm:$0xff]
      %v454 = vld [vmem:[%s193 + $0x10] sm:$0xff]
      %v455 = vld [vmem:[%s193 + $0x18] sm:$0xff]
      %v456 = vld [vmem:[%s193 + $0x20] sm:$0xff]
      %v457 = vld [vmem:[%s193 + $0x28] sm:$0xff]
      %v458 = vld [vmem:[%s193 + $0x30] sm:$0xff]
      %v459 = vld [vmem:[%s193 + $0x38] sm:$0xff]
      %v460 = vld [vmem:[%s193 + $0x40] sm:$0xff]
      %v461 = vld [vmem:[%s193 + $0x48] sm:$0xff]
      %v462 = vld [vmem:[%s193 + $0x50] sm:$0xff]
      %v463 = vld [vmem:[%s193 + $0x58] sm:$0xff]
      %v464 = vld [vmem:[%s193 + $0x60] sm:$0xff]
      %v465 = vld [vmem:[%s193 + $0x68] sm:$0xff]
      %v466 = vld [vmem:[%s193 + $0x70] sm:$0xff]
      %v467 = vld [vmem:[%s193 + $0x78] sm:$0xff]
      %v468 = vld [vmem:[%s193 + $0x80] sm:$0xff]
      %v469 = vld [vmem:[%s193 + $0x88] sm:$0xff]
      %v470 = vld [vmem:[%s193 + $0x90] sm:$0xff]
      %v471 = vld [vmem:[%s193 + $0x98] sm:$0xff]
      %v472 = vld [vmem:[%s193 + $0xa0] sm:$0xff]
      %v473 = vld [vmem:[%s193 + $0xa8] sm:$0xff]
      %v474 = vld [vmem:[%s193 + $0xb0] sm:$0xff]
      %v475 = vld [vmem:[%s193 + $0xb8] sm:$0xff]
      %v476 = vld [vmem:[%s193 + $0xc0] sm:$0xff]
      %v477 = vld [vmem:[%s193 + $0xc8] sm:$0xff]
      %v478 = vld [vmem:[%s193 + $0xd0] sm:$0xff]
      %v479 = vld [vmem:[%s193 + $0xd8] sm:$0xff]
      %v480 = vld [vmem:[%s193 + $0xe0] sm:$0xff]
      %v481 = vld [vmem:[%s193 + $0xe8] sm:$0xff]
      %v482 = vld [vmem:[%s193 + $0xf0] sm:$0xff]
      %v483 = vld [vmem:[%s193 + $0xf8] sm:$0xff]
      %484 = vmatprep.subr.mxu0 0.0
      %485 = vmatpush1.msra.mxu0 %v435
      %486 = vmatprep.subr.mxu0 0.0
      %487 = vmatpush1.msra.mxu0 %v434
      %488 = vmatprep.subr.mxu0 0.0
      %489 = vmatpush1.msra.mxu0 %v433
      %490 = vmatprep.subr.mxu0 0.0
      %491 = vmatpush1.msra.mxu0 %v432
      %492 = vmatprep.subr.mxu0 0.0
      %493 = vmatpush1.msra.mxu0 %v431
      %494 = vmatprep.subr.mxu0 0.0
      %495 = vmatpush1.msra.mxu0 %v430
      %496 = vmatprep.subr.mxu0 0.0
      %497 = vmatpush1.msra.mxu0 %v429
      %498 = vmatprep.subr.mxu0 0.0
      %499 = vmatpush1.msra.mxu0 %v428
      %500 = vmatprep.subr.mxu0 0.0
      %501 = vmatpush1.msra.mxu0 %v427
      %502 = vmatprep.subr.mxu0 0.0
      %503 = vmatpush1.msra.mxu0 %v426
      %504 = vmatprep.subr.mxu0 0.0
      %505 = vmatpush1.msra.mxu0 %v425
      %506 = vmatprep.subr.mxu0 0.0
      %507 = vmatpush1.msra.mxu0 %v424
      %508 = vmatprep.subr.mxu0 0.0
      %509 = vmatpush1.msra.mxu0 %v423
      %510 = vmatprep.subr.mxu0 0.0
      %511 = vmatpush1.msra.mxu0 %v422
      %512 = vmatprep.subr.mxu0 0.0
      %513 = vmatpush1.msra.mxu0 %v421
      %514 = vmatprep.subr.mxu0 0.0
      %515 = vmatpush1.msra.mxu0 %v420
      %516 = vmatprep.subr.mxu0 0.0
      %517 = vmatpush2.msra.mxu0 %v451
      %518 = vmatprep.subr.mxu0 0.0
      %519 = vmatpush2.msra.mxu0 %v450
      %520 = vmatprep.subr.mxu0 0.0
      %521 = vmatpush2.msra.mxu0 %v449
      %522 = vmatprep.subr.mxu0 0.0
      %523 = vmatpush2.msra.mxu0 %v448
      %524 = vmatprep.subr.mxu0 0.0
      %525 = vmatpush2.msra.mxu0 %v447
      %526 = vmatprep.subr.mxu0 0.0
      %527 = vmatpush2.msra.mxu0 %v446
      %528 = vmatprep.subr.mxu0 0.0
      %529 = vmatpush2.msra.mxu0 %v445
      %530 = vmatprep.subr.mxu0 0.0
      %531 = vmatpush2.msra.mxu0 %v444
      %532 = vmatprep.subr.mxu0 0.0
      %533 = vmatpush2.msra.mxu0 %v443
      %534 = vmatprep.subr.mxu0 0.0
      %535 = vmatpush2.msra.mxu0 %v442
      %536 = vmatprep.subr.mxu0 0.0
      %537 = vmatpush2.msra.mxu0 %v441
      %538 = vmatprep.subr.mxu0 0.0
      %539 = vmatpush2.msra.mxu0 %v440
      %540 = vmatprep.subr.mxu0 0.0
      %541 = vmatpush2.msra.mxu0 %v439
      %542 = vmatprep.subr.mxu0 0.0
      %543 = vmatpush2.msra.mxu0 %v438
      %544 = vmatprep.subr.mxu0 0.0
      %545 = vmatpush2.msra.mxu0 %v437
      %546 = vmatprep.subr.mxu0 0.0
      %547 = vmatpush2.msra.mxu0 %v436
      %548 = vmatprep.mubr.f32.mxu0 %v354
      %549 = vmatmul.mubr.f32.gmra.mxu0 %v353
      %v550 = vpop.f32.mrf.mxu0
      %v551 = vadd.f32 0.0, %v550
      %v552 = vpop.f32.mrf.mxu0
      %553 = vmatprep.mubr.f32.mxu0 %v356
      %554 = vmatmul.mubr.f32.gmra.mxu0 %v355
      %v555 = vpop.f32.mrf.mxu0
      %v556 = vadd.f32 0.0, %v555
      %v557 = vpop.f32.mrf.mxu0
      %558 = vmatprep.mubr.f32.mxu0 %v358
      %559 = vmatmul.mubr.f32.gmra.mxu0 %v357
      %v560 = vpop.f32.mrf.mxu0
      %v561 = vadd.f32 0.0, %v560
      %v562 = vpop.f32.mrf.mxu0
      %563 = vmatprep.mubr.f32.mxu0 %v360
      %564 = vmatmul.mubr.f32.gmra.mxu0 %v359
      %v565 = vpop.f32.mrf.mxu0
      %v566 = vadd.f32 0.0, %v565
      %v567 = vpop.f32.mrf.mxu0
      %568 = vmatprep.mubr.f32.mxu0 %v362
      %569 = vmatmul.mubr.f32.gmra.mxu0 %v361
      %v570 = vpop.f32.mrf.mxu0
      %v571 = vadd.f32 0.0, %v570
      %v572 = vpop.f32.mrf.mxu0
      %573 = vmatprep.mubr.f32.mxu0 %v364
      %574 = vmatmul.mubr.f32.gmra.mxu0 %v363
      %v575 = vpop.f32.mrf.mxu0
      %v576 = vadd.f32 0.0, %v575
      %v577 = vpop.f32.mrf.mxu0
      %578 = vmatprep.mubr.f32.mxu0 %v366
      %579 = vmatmul.mubr.f32.gmra.mxu0 %v365
      %v580 = vpop.f32.mrf.mxu0
      %v581 = vadd.f32 0.0, %v580
      %v582 = vpop.f32.mrf.mxu0
      %583 = vmatprep.mubr.f32.mxu0 %v368
      %584 = vmatmul.mubr.f32.gmra.mxu0 %v367
      %v585 = vpop.f32.mrf.mxu0
      %v586 = vadd.f32 0.0, %v585
      %v587 = vpop.f32.mrf.mxu0
      %588 = vmatprep.mubr.f32.mxu0 %v370
      %589 = vmatmul.mubr.f32.gmra.mxu0 %v369
      %v590 = vpop.f32.mrf.mxu0
      %v591 = vadd.f32 0.0, %v590
      %v592 = vpop.f32.mrf.mxu0
      %593 = vmatprep.mubr.f32.mxu0 %v372
      %594 = vmatmul.mubr.f32.gmra.mxu0 %v371
      %v595 = vpop.f32.mrf.mxu0
      %v596 = vadd.f32 0.0, %v595
      %v597 = vpop.f32.mrf.mxu0
      %598 = vmatprep.mubr.f32.mxu0 %v374
      %599 = vmatmul.mubr.f32.gmra.mxu0 %v373
      %v600 = vpop.f32.mrf.mxu0
      %v601 = vadd.f32 0.0, %v600
      %v602 = vpop.f32.mrf.mxu0
      %603 = vmatprep.mubr.f32.mxu0 %v376
      %604 = vmatmul.mubr.f32.gmra.mxu0 %v375
      %v605 = vpop.f32.mrf.mxu0
      %v606 = vadd.f32 0.0, %v605
      %v607 = vpop.f32.mrf.mxu0
      %608 = vmatprep.mubr.f32.mxu0 %v378
      %609 = vmatmul.mubr.f32.gmra.mxu0 %v377
      %v610 = vpop.f32.mrf.mxu0
      %v611 = vadd.f32 0.0, %v610
      %v612 = vpop.f32.mrf.mxu0
      %613 = vmatprep.mubr.f32.mxu0 %v380
      %614 = vmatmul.mubr.f32.gmra.mxu0 %v379
      %v615 = vpop.f32.mrf.mxu0
      %v616 = vadd.f32 0.0, %v615
      %v617 = vpop.f32.mrf.mxu0
      %618 = vmatprep.mubr.f32.mxu0 %v382
      %619 = vmatmul.mubr.f32.gmra.mxu0 %v381
      %v620 = vpop.f32.mrf.mxu0
      %v621 = vadd.f32 0.0, %v620
      %v622 = vpop.f32.mrf.mxu0
      %623 = vmatprep.mubr.f32.mxu0 %v384
      %624 = vmatmul.mubr.f32.gmra.mxu0 %v383
      %v625 = vpop.f32.mrf.mxu0
      %v626 = vadd.f32 0.0, %v625
      %v627 = vpop.f32.mrf.mxu0
      %628 = vmatprep.mubr.f32.mxu0 %v386
      %629 = vmatmul.mubr.f32.gmra.mxu0 %v385
      %v630 = vpop.f32.mrf.mxu0
      %v631 = vadd.f32 0.0, %v630
      %v632 = vpop.f32.mrf.mxu0
      %633 = vmatprep.mubr.f32.mxu0 %v388
      %634 = vmatmul.mubr.f32.gmra.mxu0 %v387
      %v635 = vpop.f32.mrf.mxu0
      %v636 = vadd.f32 0.0, %v635
      %v637 = vpop.f32.mrf.mxu0
      %638 = vmatprep.mubr.f32.mxu0 %v390
      %639 = vmatmul.mubr.f32.gmra.mxu0 %v389
      %v640 = vpop.f32.mrf.mxu0
      %v641 = vadd.f32 0.0, %v640
      %v642 = vpop.f32.mrf.mxu0
      %643 = vmatprep.mubr.f32.mxu0 %v392
      %644 = vmatmul.mubr.f32.gmra.mxu0 %v391
      %v645 = vpop.f32.mrf.mxu0
      %v646 = vadd.f32 0.0, %v645
      %v647 = vpop.f32.mrf.mxu0
      %648 = vmatprep.mubr.f32.mxu0 %v394
      %649 = vmatmul.mubr.f32.gmra.mxu0 %v393
      %v650 = vpop.f32.mrf.mxu0
      %v651 = vadd.f32 0.0, %v650
      %v652 = vpop.f32.mrf.mxu0
      %653 = vmatprep.mubr.f32.mxu0 %v396
      %654 = vmatmul.mubr.f32.gmra.mxu0 %v395
      %v655 = vpop.f32.mrf.mxu0
      %v656 = vadd.f32 0.0, %v655
      %v657 = vpop.f32.mrf.mxu0
      %658 = vmatprep.mubr.f32.mxu0 %v398
      %659 = vmatmul.mubr.f32.gmra.mxu0 %v397
      %v660 = vpop.f32.mrf.mxu0
      %v661 = vadd.f32 0.0, %v660
      %v662 = vpop.f32.mrf.mxu0
      %663 = vmatprep.mubr.f32.mxu0 %v400
      %664 = vmatmul.mubr.f32.gmra.mxu0 %v399
      %v665 = vpop.f32.mrf.mxu0
      %v666 = vadd.f32 0.0, %v665
      %v667 = vpop.f32.mrf.mxu0
      %668 = vmatprep.mubr.f32.mxu0 %v402
      %669 = vmatmul.mubr.f32.gmra.mxu0 %v401
      %v670 = vpop.f32.mrf.mxu0
      %v671 = vadd.f32 0.0, %v670
      %v672 = vpop.f32.mrf.mxu0
      %673 = vmatprep.mubr.f32.mxu0 %v404
      %674 = vmatmul.mubr.f32.gmra.mxu0 %v403
      %v675 = vpop.f32.mrf.mxu0
      %v676 = vadd.f32 0.0, %v675
      %v677 = vpop.f32.mrf.mxu0
      %678 = vmatprep.mubr.f32.mxu0 %v406
      %679 = vmatmul.mubr.f32.gmra.mxu0 %v405
      %v680 = vpop.f32.mrf.mxu0
      %v681 = vadd.f32 0.0, %v680
      %v682 = vpop.f32.mrf.mxu0
      %683 = vmatprep.mubr.f32.mxu0 %v408
      %684 = vmatmul.mubr.f32.gmra.mxu0 %v407
      %v685 = vpop.f32.mrf.mxu0
      %v686 = vadd.f32 0.0, %v685
      %v687 = vpop.f32.mrf.mxu0
      %688 = vmatprep.mubr.f32.mxu0 %v410
      %689 = vmatmul.mubr.f32.gmra.mxu0 %v409
      %v690 = vpop.f32.mrf.mxu0
      %v691 = vadd.f32 0.0, %v690
      %v692 = vpop.f32.mrf.mxu0
      %693 = vmatprep.mubr.f32.mxu0 %v412
      %694 = vmatmul.mubr.f32.gmra.mxu0 %v411
      %v695 = vpop.f32.mrf.mxu0
      %v696 = vadd.f32 0.0, %v695
      %v697 = vpop.f32.mrf.mxu0
      %698 = vmatprep.mubr.f32.mxu0 %v414
      %699 = vmatmul.mubr.f32.gmra.mxu0 %v413
      %v700 = vpop.f32.mrf.mxu0
      %v701 = vadd.f32 0.0, %v700
      %v702 = vpop.f32.mrf.mxu0
      %703 = vmatprep.mubr.f32.mxu0 %v416
      %704 = vmatmul.mubr.f32.gmra.mxu0 %v415
      %v705 = vpop.f32.mrf.mxu0
      %v706 = vadd.f32 0.0, %v705
      %v707 = vpop.f32.mrf.mxu0
      %708 = vdwg.mxu0
      %v709 = vadd.f32 %v452, %v551
      %v710 = vadd.f32 %v453, %v556
      %v711 = vadd.f32 %v454, %v561
      %v712 = vadd.f32 %v455, %v566
      %v713 = vadd.f32 %v456, %v571
      %v714 = vadd.f32 %v457, %v576
      %v715 = vadd.f32 %v458, %v581
      %v716 = vadd.f32 %v459, %v586
      %v717 = vadd.f32 %v460, %v591
      %v718 = vadd.f32 %v461, %v596
      %v719 = vadd.f32 %v462, %v601
      %v720 = vadd.f32 %v463, %v606
      %v721 = vadd.f32 %v464, %v611
      %v722 = vadd.f32 %v465, %v616
      %v723 = vadd.f32 %v466, %v621
      %v724 = vadd.f32 %v467, %v626
      %v725 = vadd.f32 %v468, %v631
      %v726 = vadd.f32 %v469, %v636
      %v727 = vadd.f32 %v470, %v641
      %v728 = vadd.f32 %v471, %v646
      %v729 = vadd.f32 %v472, %v651
      %v730 = vadd.f32 %v473, %v656
      %v731 = vadd.f32 %v474, %v661
      %v732 = vadd.f32 %v475, %v666
      %v733 = vadd.f32 %v476, %v671
      %v734 = vadd.f32 %v477, %v676
      %v735 = vadd.f32 %v478, %v681
      %v736 = vadd.f32 %v479, %v686
      %v737 = vadd.f32 %v480, %v691
      %v738 = vadd.f32 %v481, %v696
      %v739 = vadd.f32 %v482, %v701
      %v740 = vadd.f32 %v483, %v706
      %741 = vst [vmem:[%s193] sm:$0xff] %v709
      %742 = vst [vmem:[%s193 + $0x8] sm:$0xff] %v710
      %743 = vst [vmem:[%s193 + $0x10] sm:$0xff] %v711
      %744 = vst [vmem:[%s193 + $0x18] sm:$0xff] %v712
      %745 = vst [vmem:[%s193 + $0x20] sm:$0xff] %v713
      %746 = vst [vmem:[%s193 + $0x28] sm:$0xff] %v714
      %747 = vst [vmem:[%s193 + $0x30] sm:$0xff] %v715
      %748 = vst [vmem:[%s193 + $0x38] sm:$0xff] %v716
      %749 = vst [vmem:[%s193 + $0x40] sm:$0xff] %v717
      %750 = vst [vmem:[%s193 + $0x48] sm:$0xff] %v718
      %751 = vst [vmem:[%s193 + $0x50] sm:$0xff] %v719
      %752 = vst [vmem:[%s193 + $0x58] sm:$0xff] %v720
      %753 = vst [vmem:[%s193 + $0x60] sm:$0xff] %v721
      %754 = vst [vmem:[%s193 + $0x68] sm:$0xff] %v722
      %755 = vst [vmem:[%s193 + $0x70] sm:$0xff] %v723
      %756 = vst [vmem:[%s193 + $0x78] sm:$0xff] %v724
      %757 = vst [vmem:[%s193 + $0x80] sm:$0xff] %v725
      %758 = vst [vmem:[%s193 + $0x88] sm:$0xff] %v726
      %759 = vst [vmem:[%s193 + $0x90] sm:$0xff] %v727
      %760 = vst [vmem:[%s193 + $0x98] sm:$0xff] %v728
      %761 = vst [vmem:[%s193 + $0xa0] sm:$0xff] %v729
      %762 = vst [vmem:[%s193 + $0xa8] sm:$0xff] %v730
      %763 = vst [vmem:[%s193 + $0xb0] sm:$0xff] %v731
      %764 = vst [vmem:[%s193 + $0xb8] sm:$0xff] %v732
      %765 = vst [vmem:[%s193 + $0xc0] sm:$0xff] %v733
      %766 = vst [vmem:[%s193 + $0xc8] sm:$0xff] %v734
      %767 = vst [vmem:[%s193 + $0xd0] sm:$0xff] %v735
      %768 = vst [vmem:[%s193 + $0xd8] sm:$0xff] %v736
      %769 = vst [vmem:[%s193 + $0xe0] sm:$0xff] %v737
      %770 = vst [vmem:[%s193 + $0xe8] sm:$0xff] %v738
      %771 = vst [vmem:[%s193 + $0xf0] sm:$0xff] %v739
      %772 = vst [vmem:[%s193 + $0xf8] sm:$0xff] %v740
      %s773 = sadd.s32 %s18, 1
      %p774 = scmp.lt.s32.totalorder %s773, 3
      %p775 = pnand %p199, %p774
      %p776 = pneg %p775
      // Predicated region
      $region37: #{_lightgcn_stack_impl.1} parent=27 // pred_check
        _
      $region38: #{_lightgcn_stack_impl.1} parent=27 // pred_check_branch
        %778 = sbr.rel (%p775) target = $region40
      $region39: #{_lightgcn_stack_impl.1} parent=27 // pred_region
        %v779 = vld [vmem:[%s193] sm:$0xff]
        %v780 = vld [vmem:[%s193 + $0x8] sm:$0xff]
        %v781 = vld [vmem:[%s193 + $0x10] sm:$0xff]
        %v782 = vld [vmem:[%s193 + $0x18] sm:$0xff]
        %v783 = vld [vmem:[%s193 + $0x20] sm:$0xff]
        %v784 = vld [vmem:[%s193 + $0x28] sm:$0xff]
        %v785 = vld [vmem:[%s193 + $0x30] sm:$0xff]
        %v786 = vld [vmem:[%s193 + $0x38] sm:$0xff]
        %v787 = vld [vmem:[%s193 + $0x40] sm:$0xff]
        %v788 = vld [vmem:[%s193 + $0x48] sm:$0xff]
        %v789 = vld [vmem:[%s193 + $0x50] sm:$0xff]
        %v790 = vld [vmem:[%s193 + $0x58] sm:$0xff]
        %v791 = vld [vmem:[%s193 + $0x60] sm:$0xff]
        %v792 = vld [vmem:[%s193 + $0x68] sm:$0xff]
        %v793 = vld [vmem:[%s193 + $0x70] sm:$0xff]
        %v794 = vld [vmem:[%s193 + $0x78] sm:$0xff]
        %v795 = vld [vmem:[%s193 + $0x80] sm:$0xff]
        %v796 = vld [vmem:[%s193 + $0x88] sm:$0xff]
        %v797 = vld [vmem:[%s193 + $0x90] sm:$0xff]
        %v798 = vld [vmem:[%s193 + $0x98] sm:$0xff]
        %v799 = vld [vmem:[%s193 + $0xa0] sm:$0xff]
        %v800 = vld [vmem:[%s193 + $0xa8] sm:$0xff]
        %v801 = vld [vmem:[%s193 + $0xb0] sm:$0xff]
        %v802 = vld [vmem:[%s193 + $0xb8] sm:$0xff]
        %v803 = vld [vmem:[%s193 + $0xc0] sm:$0xff]
        %v804 = vld [vmem:[%s193 + $0xc8] sm:$0xff]
        %v805 = vld [vmem:[%s193 + $0xd0] sm:$0xff]
        %v806 = vld [vmem:[%s193 + $0xd8] sm:$0xff]
        %v807 = vld [vmem:[%s193 + $0xe0] sm:$0xff]
        %v808 = vld [vmem:[%s193 + $0xe8] sm:$0xff]
        %v809 = vld [vmem:[%s193 + $0xf0] sm:$0xff]
        %v810 = vld [vmem:[%s193 + $0xf8] sm:$0xff]
        %s811 = smul.u32 %s280, 256
        %s812 = sadd.s32 %s281, %s811
        %s813 = scalar_lea.vmem [#allocation2], %s812
        %814 = vst [vmem:[%s813] sm:$0xff] %v779
        %815 = vst [vmem:[%s813 + $0x8] sm:$0xff] %v780
        %816 = vst [vmem:[%s813 + $0x10] sm:$0xff] %v781
        %817 = vst [vmem:[%s813 + $0x18] sm:$0xff] %v782
        %818 = vst [vmem:[%s813 + $0x20] sm:$0xff] %v783
        %819 = vst [vmem:[%s813 + $0x28] sm:$0xff] %v784
        %820 = vst [vmem:[%s813 + $0x30] sm:$0xff] %v785
        %821 = vst [vmem:[%s813 + $0x38] sm:$0xff] %v786
        %822 = vst [vmem:[%s813 + $0x40] sm:$0xff] %v787
        %823 = vst [vmem:[%s813 + $0x48] sm:$0xff] %v788
        %824 = vst [vmem:[%s813 + $0x50] sm:$0xff] %v789
        %825 = vst [vmem:[%s813 + $0x58] sm:$0xff] %v790
        %826 = vst [vmem:[%s813 + $0x60] sm:$0xff] %v791
        %827 = vst [vmem:[%s813 + $0x68] sm:$0xff] %v792
        %828 = vst [vmem:[%s813 + $0x70] sm:$0xff] %v793
        %829 = vst [vmem:[%s813 + $0x78] sm:$0xff] %v794
        %830 = vst [vmem:[%s813 + $0x80] sm:$0xff] %v795
        %831 = vst [vmem:[%s813 + $0x88] sm:$0xff] %v796
        %832 = vst [vmem:[%s813 + $0x90] sm:$0xff] %v797
        %833 = vst [vmem:[%s813 + $0x98] sm:$0xff] %v798
        %834 = vst [vmem:[%s813 + $0xa0] sm:$0xff] %v799
        %835 = vst [vmem:[%s813 + $0xa8] sm:$0xff] %v800
        %836 = vst [vmem:[%s813 + $0xb0] sm:$0xff] %v801
        %837 = vst [vmem:[%s813 + $0xb8] sm:$0xff] %v802
        %838 = vst [vmem:[%s813 + $0xc0] sm:$0xff] %v803
        %839 = vst [vmem:[%s813 + $0xc8] sm:$0xff] %v804
        %840 = vst [vmem:[%s813 + $0xd0] sm:$0xff] %v805
        %841 = vst [vmem:[%s813 + $0xd8] sm:$0xff] %v806
        %842 = vst [vmem:[%s813 + $0xe0] sm:$0xff] %v807
        %843 = vst [vmem:[%s813 + $0xe8] sm:$0xff] %v808
        %844 = vst [vmem:[%s813 + $0xf0] sm:$0xff] %v809
        %845 = vst [vmem:[%s813 + $0xf8] sm:$0xff] %v810
      $region40: #{_lightgcn_stack_impl.1} parent=27 // pred_fallthru
        _
      %s846 = smul.u32 32, %s19
      %p847 = scmp.lt.s32.totalorder %s18, 2
      %s848 = scalar_select %p847, %s18, 2
      %p849 = scmp.lt.s32.totalorder %s846, 31
      %s850 = scalar_select %p849, %s846, 31
      %s851 = smul.addr %s848, 32
      %s852 = sadd.s32 %s850, %s851
      %s853 = smul.addr %s852, 8
      %s854 = scalar_lea.vmem %s2, %s853
      // Predicated region
      $region41: #{_lightgcn_stack_impl.1} parent=27 // pred_check
        %p855 = pneg %p101
      $region42: #{_lightgcn_stack_impl.1} parent=27 // pred_check_branch
        %857 = sbr.rel (%p855) target = $region44
      $region43: #{_lightgcn_stack_impl.1} parent=27 // pred_region
        %s858 = smul.u32 32, %s19
      $region44: #{_lightgcn_stack_impl.1} parent=27 // pred_fallthru
        _
    $region28: #{_lightgcn_stack_impl.1} parent=5 // pred_fallthru
      _
    %p859 = scmp.le.s32.totalorder 2, %s8
    // Predicated region
    $region45: #{_lightgcn_stack_impl.1} parent=5 // pred_check
      %p860 = pneg %p859
    $region46: #{_lightgcn_stack_impl.1} parent=5 // pred_check_branch
      %862 = sbr.rel (%p860) target = $region48
    $region47: #{_lightgcn_stack_impl.1} parent=5 // pred_region
      %s863 = ssub.s32 %s8, 2
      // Predicated region
      $region49: #{_lightgcn_stack_impl.1} parent=47 // pred_check
        %p864 = pneg %p107
      $region50: #{_lightgcn_stack_impl.1} parent=47 // pred_check_branch
        %866 = sbr.rel (%p864) target = $region52
      $region51: #{_lightgcn_stack_impl.1} parent=47 // pred_region
        %s867 = smul.u32 32, %s22
        %p868 = scmp.lt.s32.totalorder %s21, 2
        %s869 = scalar_select %p868, %s21, 2
        %p870 = scmp.lt.s32.totalorder %s867, 31
        %s871 = scalar_select %p870, %s867, 31
        %s872 = smul.addr %s869, 32
        %s873 = sadd.s32 %s871, %s872
        %s874 = smul.addr %s873, 8
        %s875 = scalar_lea.vmem %s2, %s874
      $region52: #{_lightgcn_stack_impl.1} parent=47 // pred_fallthru
        _
    $region48: #{_lightgcn_stack_impl.1} parent=5 // pred_fallthru
      _
  $region6: #{_lightgcn_stack_impl.1} parent=0 // loop_footer
    %s12 = sadd.s32 1, %s8
  $region7: #{_lightgcn_stack_impl.1} parent=0 // loop_footer_branch
    %7 = sbr.rel target = $region3
  $region8: #{_lightgcn_stack_impl.1} parent=0 // loop_exit
    _

</llo_original>
